<compile_context>
chip_gen: v7x
topology: tpu7x:2x2x1
jax: 0.10.0
libtpu: 0.0.40
codegen_flags: <defaults>
</compile_context>

<pallas_src>
import math

import jax
import jax.numpy as jnp
from jax import lax
from jax.experimental import pallas as pl
from jax.experimental.pallas import tpu as pltpu

# --- small config (head_dim = dim // heads) ---
BATCH = 2
SEQ = 8           # N tokens per image
DIM = 32          # C embedding dim
HEADS = 4
HEAD_DIM = DIM // HEADS   # 8
LN_EPS = 1e-5
DTYPE = jnp.float32


def _vil_block_kernel(x_ref, ln_g_ref, ln_b_ref, wqkv_ref, bqkv_ref,
                      wproj_ref, bproj_ref, o_ref):
    """One grid step == one batch image (grid axis is 'parallel').

    x_ref:     (1, N, C)    VMEM
    ln_g_ref:  (1, C)       VMEM   LayerNorm gamma
    ln_b_ref:  (1, C)       VMEM   LayerNorm beta
    wqkv_ref:  (C, 3C)      VMEM   q columns pre-scaled by 1/sqrt(Dh)
    bqkv_ref:  (1, 3C)      VMEM   q slice pre-scaled by 1/sqrt(Dh)
    wproj_ref: (C, C)       VMEM
    bproj_ref: (1, C)       VMEM
    o_ref:     (1, N, C)    VMEM
    """
    x = x_ref[0]                                                # (N, C)

    # --- fused pre-LayerNorm -------------------------------------------------
    mu = jnp.mean(x, axis=-1, keepdims=True)
    xc = x - mu
    var = jnp.mean(xc * xc, axis=-1, keepdims=True)
    xn = xc * lax.rsqrt(var + LN_EPS)
    xn = xn * ln_g_ref[...] + ln_b_ref[...]                     # (N, C)

    # --- fused qkv projection: single (N, C) @ (C, 3C) MXU matmul ------------
    qkv = jnp.dot(xn, wqkv_ref[...],
                  preferred_element_type=jnp.float32) + bqkv_ref[...]   # (N, 3C)

    # --- per-head scaled-softmax mixing (static lane views of qkv) -----------
    ctx_heads = []
    for h in range(HEADS):                       # HEADS is small & static -> unrolled
        lo = h * HEAD_DIM
        q = qkv[:, lo:lo + HEAD_DIM]                             # (N, Dh) (pre-scaled)
        k = qkv[:, DIM + lo:DIM + lo + HEAD_DIM]                 # (N, Dh)
        v = qkv[:, 2 * DIM + lo:2 * DIM + lo + HEAD_DIM]         # (N, Dh)

        # Scores without an explicit transpose: contract last dims on the MXU.
        s = lax.dot_general(q, k, dimension_numbers=(((1,), (1,)), ((), ())),
                            preferred_element_type=jnp.float32)  # (N, N)
        m = jnp.max(s, axis=-1, keepdims=True)
        p = jnp.exp(s - m)
        p = p * pl.reciprocal(jnp.sum(p, axis=-1, keepdims=True), approx=True)

        ctx_heads.append(jnp.dot(p, v, preferred_element_type=jnp.float32))

    # One vreg wide -> a single lane concat, then one (N, C) @ (C, C) matmul.
    ctx = jnp.concatenate(ctx_heads, axis=-1)                    # (N, C)
    y = jnp.dot(ctx, wproj_ref[...],
                preferred_element_type=jnp.float32) + bproj_ref[...]

    # --- residual ------------------------------------------------------------
    o_ref[0] = (x + y).astype(o_ref.dtype)


def vil_block_pallas(x, ln_g, ln_b, w_qkv, b_qkv, w_proj, b_proj):
    B, N, C = x.shape
    scale = 1.0 / math.sqrt(HEAD_DIM)

    # Trace-time (free) preprocessing: fold the attention scale into the
    # q columns of the fused qkv projection. Weights stay 2-D and lane-dense.
    w_qkv_s = w_qkv.at[:, :C].multiply(scale)
    b_qkv_s = b_qkv.at[:, :C].multiply(scale)

    return pl.pallas_call(
        _vil_block_kernel,
        out_shape=jax.ShapeDtypeStruct((B, N, C), x.dtype),
        grid_spec=pltpu.PrefetchScalarGridSpec(
            num_scalar_prefetch=0,
            grid=(B,),  # independent images; sharded across TCs on v7x
            in_specs=[
                pl.BlockSpec((1, N, C), lambda b: (b, 0, 0)),
                pl.BlockSpec((1, C), lambda b: (0, 0)),
                pl.BlockSpec((1, C), lambda b: (0, 0)),
                pl.BlockSpec((C, 3 * C), lambda b: (0, 0)),
                pl.BlockSpec((1, 3 * C), lambda b: (0, 0)),
                pl.BlockSpec((C, C), lambda b: (0, 0)),
                pl.BlockSpec((1, C), lambda b: (0, 0)),
            ],
            out_specs=pl.BlockSpec((1, N, C), lambda b: (b, 0, 0)),
        ),
        compiler_params=pltpu.CompilerParams(
            dimension_semantics=("parallel",),
        ),
    )(x, ln_g, ln_b, w_qkv_s, b_qkv_s, w_proj, b_proj)


def vil_block_reference(x, ln_g, ln_b, w_qkv, b_qkv, w_proj, b_proj):
    """Plain-JAX reference for the fused pre-norm token-mixing block."""
    B, N, C = x.shape
    mu = jnp.mean(x, axis=-1, keepdims=True)
    var = jnp.mean((x - mu) ** 2, axis=-1, keepdims=True)
    xn = (x - mu) / jnp.sqrt(var + LN_EPS) * ln_g[0] + ln_b[0]

    qkv = xn @ w_qkv + b_qkv[0]                                  # (B, N, 3C)
    qkv = qkv.reshape(B, N, 3, HEADS, HEAD_DIM)
    qkv = jnp.transpose(qkv, (2, 0, 3, 1, 4))                    # (3, B, H, N, Dh)
    q, k, v = qkv[0], qkv[1], qkv[2]
    scale = 1.0 / math.sqrt(HEAD_DIM)
    s = jnp.einsum("bhqd,bhkd->bhqk", q, k) * scale
    p = jax.nn.softmax(s, axis=-1)
    o = jnp.einsum("bhqk,bhkd->bhqd", p, v)                      # (B, H, N, Dh)
    o = jnp.transpose(o, (0, 2, 1, 3)).reshape(B, N, C)
    return x + (o @ w_proj + b_proj[0])


def _trunc_normal(key, shape, std=0.02, dtype=DTYPE):
    # torch.nn.init.trunc_normal_ default truncates at +/- 2 std
    return std * jax.random.truncated_normal(key, -2.0, 2.0, shape, dtype)


if __name__ == "__main__":
    root = jax.random.PRNGKey(0)
    k_x, k_lg, k_lb, k_wqkv, k_bqkv, k_wproj, k_bproj = jax.random.split(root, 7)

    # Deterministic synthetic parameters (LayerNorm(dim), Linear(dim, 3*dim),
    # Linear(dim, dim)); linear weights stored transposed (in, out) for x @ W + b.
    x = jax.random.normal(k_x, (BATCH, SEQ, DIM), dtype=DTYPE)
    ln_g = 1.0 + 0.01 * jax.random.normal(k_lg, (1, DIM), dtype=DTYPE)
    ln_b = 0.01 * jax.random.normal(k_lb, (1, DIM), dtype=DTYPE)
    w_qkv = _trunc_normal(k_wqkv, (DIM, 3 * DIM))
    b_qkv = 0.01 * jax.random.normal(k_bqkv, (1, 3 * DIM), dtype=DTYPE)
    w_proj = _trunc_normal(k_wproj, (DIM, DIM))
    b_proj = 0.01 * jax.random.normal(k_bproj, (1, DIM), dtype=DTYPE)

    out = vil_block_pallas(x, ln_g, ln_b, w_qkv, b_qkv, w_proj, b_proj)
    out = jax.block_until_ready(out)

    ref = vil_block_reference(x, ln_g, ln_b, w_qkv, b_qkv, w_proj, b_proj)
    assert out.shape == (BATCH, SEQ, DIM)
    # Slightly relaxed tolerance: softmax normalization uses the EUP approximate
    # reciprocal (pl.reciprocal(..., approx=True)).
    assert jnp.allclose(out, ref, atol=5e-4, rtol=5e-4), "mismatch vs reference"

    print("KERNEL_OK")
</pallas_src>

<mosaic_0001>
module attributes {stable_mosaic.version = 11 : i64} {
  func.func @_vil_block_kernel(%arg0: i32, %arg1: memref<1x8x32xf32, #tpu.memory_space<vmem>>, %arg2: memref<1x32xf32, #tpu.memory_space<vmem>>, %arg3: memref<1x32xf32, #tpu.memory_space<vmem>>, %arg4: memref<32x96xf32, #tpu.memory_space<vmem>>, %arg5: memref<1x96xf32, #tpu.memory_space<vmem>>, %arg6: memref<32x32xf32, #tpu.memory_space<vmem>>, %arg7: memref<1x32xf32, #tpu.memory_space<vmem>>, %arg8: memref<1x8x32xf32, #tpu.memory_space<vmem>>) attributes {dimension_semantics = [#tpu.dimension_semantics<parallel>], iteration_bounds = array<i64: 2>, scalar_prefetch = 0 : i64, scratch_operands = 0 : i64, tpu.core_type = #tpu.core_type<tc>, window_params = [{transform_indices = @transform_0, window_bounds = array<i64: 1, 8, 32>}, {pipeline_mode = #tpu.pipeline_mode<synchronous>, transform_indices = @transform_1, window_bounds = array<i64: 1, 32>}, {pipeline_mode = #tpu.pipeline_mode<synchronous>, transform_indices = @transform_2, window_bounds = array<i64: 1, 32>}, {pipeline_mode = #tpu.pipeline_mode<synchronous>, transform_indices = @transform_3, window_bounds = array<i64: 32, 96>}, {pipeline_mode = #tpu.pipeline_mode<synchronous>, transform_indices = @transform_4, window_bounds = array<i64: 1, 96>}, {pipeline_mode = #tpu.pipeline_mode<synchronous>, transform_indices = @transform_5, window_bounds = array<i64: 32, 32>}, {pipeline_mode = #tpu.pipeline_mode<synchronous>, transform_indices = @transform_6, window_bounds = array<i64: 1, 32>}, {transform_indices = @transform_7, window_bounds = array<i64: 1, 8, 32>}]} {
    %c0 = arith.constant 0 : index
    %c0_0 = arith.constant 0 : index
    %c0_1 = arith.constant 0 : index
    %0 = vector.load %arg1[%c0, %c0_0, %c0_1] : memref<1x8x32xf32, #tpu.memory_space<vmem>>, vector<1x8x32xf32>
    %1 = vector.shape_cast %0 : vector<1x8x32xf32> to vector<8x32xf32>
    %cst = arith.constant dense<0.000000e+00> : vector<8xf32>
    %2 = vector.multi_reduction <add>, %1, %cst [1] : vector<8x32xf32> to vector<8xf32>
    %3 = vector.shape_cast %2 : vector<8xf32> to vector<8x1xf32>
    %cst_2 = arith.constant 3.200000e+01 : f32
    %4 = vector.broadcast %cst_2 : f32 to vector<8x1xf32>
    %5 = arith.divf %3, %4 : vector<8x1xf32>
    %6 = vector.broadcast %5 : vector<8x1xf32> to vector<8x32xf32>
    %7 = arith.subf %1, %6 : vector<8x32xf32>
    %8 = arith.mulf %7, %7 : vector<8x32xf32>
    %cst_3 = arith.constant dense<0.000000e+00> : vector<8xf32>
    %9 = vector.multi_reduction <add>, %8, %cst_3 [1] : vector<8x32xf32> to vector<8xf32>
    %10 = vector.shape_cast %9 : vector<8xf32> to vector<8x1xf32>
    %cst_4 = arith.constant 3.200000e+01 : f32
    %11 = vector.broadcast %cst_4 : f32 to vector<8x1xf32>
    %12 = arith.divf %10, %11 : vector<8x1xf32>
    %cst_5 = arith.constant 9.99999974E-6 : f32
    %13 = vector.broadcast %cst_5 : f32 to vector<8x1xf32>
    %14 = arith.addf %12, %13 : vector<8x1xf32>
    %15 = math.rsqrt %14 : vector<8x1xf32>
    %16 = vector.broadcast %15 : vector<8x1xf32> to vector<8x32xf32>
    %17 = arith.mulf %7, %16 : vector<8x32xf32>
    %c0_6 = arith.constant 0 : index
    %c0_7 = arith.constant 0 : index
    %18 = vector.load %arg2[%c0_6, %c0_7] : memref<1x32xf32, #tpu.memory_space<vmem>>, vector<1x32xf32>
    %19 = vector.broadcast %18 : vector<1x32xf32> to vector<8x32xf32>
    %20 = arith.mulf %17, %19 : vector<8x32xf32>
    %c0_8 = arith.constant 0 : index
    %c0_9 = arith.constant 0 : index
    %21 = vector.load %arg3[%c0_8, %c0_9] : memref<1x32xf32, #tpu.memory_space<vmem>>, vector<1x32xf32>
    %22 = vector.broadcast %21 : vector<1x32xf32> to vector<8x32xf32>
    %23 = arith.addf %20, %22 : vector<8x32xf32>
    %c0_10 = arith.constant 0 : index
    %c0_11 = arith.constant 0 : index
    %24 = vector.load %arg4[%c0_10, %c0_11] : memref<32x96xf32, #tpu.memory_space<vmem>>, vector<32x96xf32>
    %cst_12 = arith.constant dense<0.000000e+00> : vector<8x96xf32>
    %25 = tpu.matmul %23, %24, %cst_12 {dimension_numbers = #tpu.dot_dimension_numbers<[1], [0], [0], [1], [0, 0, 1, 1], [], []>} : vector<8x32xf32>, vector<32x96xf32>, vector<8x96xf32> -> vector<8x96xf32>
    %c0_13 = arith.constant 0 : index
    %c0_14 = arith.constant 0 : index
    %26 = vector.load %arg5[%c0_13, %c0_14] : memref<1x96xf32, #tpu.memory_space<vmem>>, vector<1x96xf32>
    %27 = vector.broadcast %26 : vector<1x96xf32> to vector<8x96xf32>
    %28 = arith.addf %25, %27 : vector<8x96xf32>
    %29 = vector.extract_strided_slice %28 {offsets = [0, 0], sizes = [8, 8], strides = [1, 1]} : vector<8x96xf32> to vector<8x8xf32>
    %30 = vector.extract_strided_slice %28 {offsets = [0, 32], sizes = [8, 8], strides = [1, 1]} : vector<8x96xf32> to vector<8x8xf32>
    %31 = vector.extract_strided_slice %28 {offsets = [0, 64], sizes = [8, 8], strides = [1, 1]} : vector<8x96xf32> to vector<8x8xf32>
    %cst_15 = arith.constant dense<0.000000e+00> : vector<8x8xf32>
    %32 = tpu.matmul %29, %30, %cst_15 {dimension_numbers = #tpu.dot_dimension_numbers<[1], [1], [0], [0], [0, 0, 1, 0], [], []>} : vector<8x8xf32>, vector<8x8xf32>, vector<8x8xf32> -> vector<8x8xf32>
    %cst_16 = arith.constant dense<0xFF800000> : vector<8xf32>
    %33 = vector.multi_reduction <maximumf>, %32, %cst_16 [1] : vector<8x8xf32> to vector<8xf32>
    %34 = vector.shape_cast %33 : vector<8xf32> to vector<8x1xf32>
    %35 = vector.broadcast %34 : vector<8x1xf32> to vector<8x8xf32>
    %36 = arith.subf %32, %35 : vector<8x8xf32>
    %37 = math.exp %36 : vector<8x8xf32>
    %cst_17 = arith.constant dense<0.000000e+00> : vector<8xf32>
    %38 = vector.multi_reduction <add>, %37, %cst_17 [1] : vector<8x8xf32> to vector<8xf32>
    %39 = vector.shape_cast %38 : vector<8xf32> to vector<8x1xf32>
    %40 = tpu.reciprocal %39 {approx = true} : vector<8x1xf32> -> vector<8x1xf32>
    %41 = vector.broadcast %40 : vector<8x1xf32> to vector<8x8xf32>
    %42 = arith.mulf %37, %41 : vector<8x8xf32>
    %cst_18 = arith.constant dense<0.000000e+00> : vector<8x8xf32>
    %43 = tpu.matmul %42, %31, %cst_18 {dimension_numbers = #tpu.dot_dimension_numbers<[1], [0], [0], [1], [0, 0, 1, 1], [], []>} : vector<8x8xf32>, vector<8x8xf32>, vector<8x8xf32> -> vector<8x8xf32>
    %44 = vector.extract_strided_slice %28 {offsets = [0, 8], sizes = [8, 8], strides = [1, 1]} : vector<8x96xf32> to vector<8x8xf32>
    %45 = vector.extract_strided_slice %28 {offsets = [0, 40], sizes = [8, 8], strides = [1, 1]} : vector<8x96xf32> to vector<8x8xf32>
    %46 = vector.extract_strided_slice %28 {offsets = [0, 72], sizes = [8, 8], strides = [1, 1]} : vector<8x96xf32> to vector<8x8xf32>
    %cst_19 = arith.constant dense<0.000000e+00> : vector<8x8xf32>
    %47 = tpu.matmul %44, %45, %cst_19 {dimension_numbers = #tpu.dot_dimension_numbers<[1], [1], [0], [0], [0, 0, 1, 0], [], []>} : vector<8x8xf32>, vector<8x8xf32>, vector<8x8xf32> -> vector<8x8xf32>
    %cst_20 = arith.constant dense<0xFF800000> : vector<8xf32>
    %48 = vector.multi_reduction <maximumf>, %47, %cst_20 [1] : vector<8x8xf32> to vector<8xf32>
    %49 = vector.shape_cast %48 : vector<8xf32> to vector<8x1xf32>
    %50 = vector.broadcast %49 : vector<8x1xf32> to vector<8x8xf32>
    %51 = arith.subf %47, %50 : vector<8x8xf32>
    %52 = math.exp %51 : vector<8x8xf32>
    %cst_21 = arith.constant dense<0.000000e+00> : vector<8xf32>
    %53 = vector.multi_reduction <add>, %52, %cst_21 [1] : vector<8x8xf32> to vector<8xf32>
    %54 = vector.shape_cast %53 : vector<8xf32> to vector<8x1xf32>
    %55 = tpu.reciprocal %54 {approx = true} : vector<8x1xf32> -> vector<8x1xf32>
    %56 = vector.broadcast %55 : vector<8x1xf32> to vector<8x8xf32>
    %57 = arith.mulf %52, %56 : vector<8x8xf32>
    %cst_22 = arith.constant dense<0.000000e+00> : vector<8x8xf32>
    %58 = tpu.matmul %57, %46, %cst_22 {dimension_numbers = #tpu.dot_dimension_numbers<[1], [0], [0], [1], [0, 0, 1, 1], [], []>} : vector<8x8xf32>, vector<8x8xf32>, vector<8x8xf32> -> vector<8x8xf32>
    %59 = vector.extract_strided_slice %28 {offsets = [0, 16], sizes = [8, 8], strides = [1, 1]} : vector<8x96xf32> to vector<8x8xf32>
    %60 = vector.extract_strided_slice %28 {offsets = [0, 48], sizes = [8, 8], strides = [1, 1]} : vector<8x96xf32> to vector<8x8xf32>
    %61 = vector.extract_strided_slice %28 {offsets = [0, 80], sizes = [8, 8], strides = [1, 1]} : vector<8x96xf32> to vector<8x8xf32>
    %cst_23 = arith.constant dense<0.000000e+00> : vector<8x8xf32>
    %62 = tpu.matmul %59, %60, %cst_23 {dimension_numbers = #tpu.dot_dimension_numbers<[1], [1], [0], [0], [0, 0, 1, 0], [], []>} : vector<8x8xf32>, vector<8x8xf32>, vector<8x8xf32> -> vector<8x8xf32>
    %cst_24 = arith.constant dense<0xFF800000> : vector<8xf32>
    %63 = vector.multi_reduction <maximumf>, %62, %cst_24 [1] : vector<8x8xf32> to vector<8xf32>
    %64 = vector.shape_cast %63 : vector<8xf32> to vector<8x1xf32>
    %65 = vector.broadcast %64 : vector<8x1xf32> to vector<8x8xf32>
    %66 = arith.subf %62, %65 : vector<8x8xf32>
    %67 = math.exp %66 : vector<8x8xf32>
    %cst_25 = arith.constant dense<0.000000e+00> : vector<8xf32>
    %68 = vector.multi_reduction <add>, %67, %cst_25 [1] : vector<8x8xf32> to vector<8xf32>
    %69 = vector.shape_cast %68 : vector<8xf32> to vector<8x1xf32>
    %70 = tpu.reciprocal %69 {approx = true} : vector<8x1xf32> -> vector<8x1xf32>
    %71 = vector.broadcast %70 : vector<8x1xf32> to vector<8x8xf32>
    %72 = arith.mulf %67, %71 : vector<8x8xf32>
    %cst_26 = arith.constant dense<0.000000e+00> : vector<8x8xf32>
    %73 = tpu.matmul %72, %61, %cst_26 {dimension_numbers = #tpu.dot_dimension_numbers<[1], [0], [0], [1], [0, 0, 1, 1], [], []>} : vector<8x8xf32>, vector<8x8xf32>, vector<8x8xf32> -> vector<8x8xf32>
    %74 = vector.extract_strided_slice %28 {offsets = [0, 24], sizes = [8, 8], strides = [1, 1]} : vector<8x96xf32> to vector<8x8xf32>
    %75 = vector.extract_strided_slice %28 {offsets = [0, 56], sizes = [8, 8], strides = [1, 1]} : vector<8x96xf32> to vector<8x8xf32>
    %76 = vector.extract_strided_slice %28 {offsets = [0, 88], sizes = [8, 8], strides = [1, 1]} : vector<8x96xf32> to vector<8x8xf32>
    %cst_27 = arith.constant dense<0.000000e+00> : vector<8x8xf32>
    %77 = tpu.matmul %74, %75, %cst_27 {dimension_numbers = #tpu.dot_dimension_numbers<[1], [1], [0], [0], [0, 0, 1, 0], [], []>} : vector<8x8xf32>, vector<8x8xf32>, vector<8x8xf32> -> vector<8x8xf32>
    %cst_28 = arith.constant dense<0xFF800000> : vector<8xf32>
    %78 = vector.multi_reduction <maximumf>, %77, %cst_28 [1] : vector<8x8xf32> to vector<8xf32>
    %79 = vector.shape_cast %78 : vector<8xf32> to vector<8x1xf32>
    %80 = vector.broadcast %79 : vector<8x1xf32> to vector<8x8xf32>
    %81 = arith.subf %77, %80 : vector<8x8xf32>
    %82 = math.exp %81 : vector<8x8xf32>
    %cst_29 = arith.constant dense<0.000000e+00> : vector<8xf32>
    %83 = vector.multi_reduction <add>, %82, %cst_29 [1] : vector<8x8xf32> to vector<8xf32>
    %84 = vector.shape_cast %83 : vector<8xf32> to vector<8x1xf32>
    %85 = tpu.reciprocal %84 {approx = true} : vector<8x1xf32> -> vector<8x1xf32>
    %86 = vector.broadcast %85 : vector<8x1xf32> to vector<8x8xf32>
    %87 = arith.mulf %82, %86 : vector<8x8xf32>
    %cst_30 = arith.constant dense<0.000000e+00> : vector<8x8xf32>
    %88 = tpu.matmul %87, %76, %cst_30 {dimension_numbers = #tpu.dot_dimension_numbers<[1], [0], [0], [1], [0, 0, 1, 1], [], []>} : vector<8x8xf32>, vector<8x8xf32>, vector<8x8xf32> -> vector<8x8xf32>
    %89 = tpu.concatenate %43, %58, %73, %88 in 1 : vector<8x8xf32>, vector<8x8xf32>, vector<8x8xf32>, vector<8x8xf32> -> vector<8x32xf32>
    %c0_31 = arith.constant 0 : index
    %c0_32 = arith.constant 0 : index
    %90 = vector.load %arg6[%c0_31, %c0_32] : memref<32x32xf32, #tpu.memory_space<vmem>>, vector<32x32xf32>
    %cst_33 = arith.constant dense<0.000000e+00> : vector<8x32xf32>
    %91 = tpu.matmul %89, %90, %cst_33 {dimension_numbers = #tpu.dot_dimension_numbers<[1], [0], [0], [1], [0, 0, 1, 1], [], []>} : vector<8x32xf32>, vector<32x32xf32>, vector<8x32xf32> -> vector<8x32xf32>
    %c0_34 = arith.constant 0 : index
    %c0_35 = arith.constant 0 : index
    %92 = vector.load %arg7[%c0_34, %c0_35] : memref<1x32xf32, #tpu.memory_space<vmem>>, vector<1x32xf32>
    %93 = vector.broadcast %92 : vector<1x32xf32> to vector<8x32xf32>
    %94 = arith.addf %91, %93 : vector<8x32xf32>
    %95 = arith.addf %1, %94 : vector<8x32xf32>
    %c0_36 = arith.constant 0 : index
    %c0_37 = arith.constant 0 : index
    %c0_38 = arith.constant 0 : index
    %96 = vector.load %arg8[%c0_36, %c0_37, %c0_38] : memref<1x8x32xf32, #tpu.memory_space<vmem>>, vector<1x8x32xf32>
    %97 = vector.shape_cast %96 : vector<1x8x32xf32> to vector<8x32xf32>
    %98 = vector.shape_cast %95 : vector<8x32xf32> to vector<1x8x32xf32>
    tpu.vector_store %arg8[%c0_36, %c0_37, %c0_38], %98 {strides = array<i32>} : memref<1x8x32xf32, #tpu.memory_space<vmem>>, vector<1x8x32xf32>,
    return
  }
  func.func @transform_0(%arg0: i32) -> (i32, i32, i32) {
    %c0_i32 = arith.constant 0 : i32
    %c0_i32_0 = arith.constant 0 : i32
    %c0_i32_1 = arith.constant 0 : i32
    return %arg0, %c0_i32, %c0_i32_0 : i32, i32, i32
  }
  func.func @transform_1(%arg0: i32) -> (i32, i32) {
    %c0_i32 = arith.constant 0 : i32
    %c0_i32_0 = arith.constant 0 : i32
    %c0_i32_1 = arith.constant 0 : i32
    return %c0_i32, %c0_i32_0 : i32, i32
  }
  func.func @transform_2(%arg0: i32) -> (i32, i32) {
    %c0_i32 = arith.constant 0 : i32
    %c0_i32_0 = arith.constant 0 : i32
    %c0_i32_1 = arith.constant 0 : i32
    return %c0_i32, %c0_i32_0 : i32, i32
  }
  func.func @transform_3(%arg0: i32) -> (i32, i32) {
    %c0_i32 = arith.constant 0 : i32
    %c0_i32_0 = arith.constant 0 : i32
    %c0_i32_1 = arith.constant 0 : i32
    return %c0_i32, %c0_i32_0 : i32, i32
  }
  func.func @transform_4(%arg0: i32) -> (i32, i32) {
    %c0_i32 = arith.constant 0 : i32
    %c0_i32_0 = arith.constant 0 : i32
    %c0_i32_1 = arith.constant 0 : i32
    return %c0_i32, %c0_i32_0 : i32, i32
  }
  func.func @transform_5(%arg0: i32) -> (i32, i32) {
    %c0_i32 = arith.constant 0 : i32
    %c0_i32_0 = arith.constant 0 : i32
    %c0_i32_1 = arith.constant 0 : i32
    return %c0_i32, %c0_i32_0 : i32, i32
  }
  func.func @transform_6(%arg0: i32) -> (i32, i32) {
    %c0_i32 = arith.constant 0 : i32
    %c0_i32_0 = arith.constant 0 : i32
    %c0_i32_1 = arith.constant 0 : i32
    return %c0_i32, %c0_i32_0 : i32, i32
  }
  func.func @transform_7(%arg0: i32) -> (i32, i32, i32) {
    %c0_i32 = arith.constant 0 : i32
    %c0_i32_0 = arith.constant 0 : i32
    %c0_i32_1 = arith.constant 0 : i32
    return %arg0, %c0_i32, %c0_i32_0 : i32, i32, i32
  }
}

</mosaic_0001>

<llo_original>
// kernel: tpu_custom_call.1
$region0: #{tpu_custom_call.1}
  #allocation0 [shape = 'u32[]', space=smem, size = 0x4, offset = 0x4, fixed_abs, tag = 'smem constant byte address 0x4 - core index']
  #allocation1 [shape = 'u32[144,128]{1,0:T(1,128)}', space=vmem, size = 0x12000, scoped, tag = 'internal scratch']
  %s0 = inlined_call_operand.hbm [shape: f32[2,8,32], index: 0, kind: input, shape index: {}]
  %s1 = inlined_call_operand.vmem [shape: f32[1,32], index: 1, kind: input, shape index: {}]
  %s2 = inlined_call_operand.vmem [shape: f32[1,32], index: 2, kind: input, shape index: {}]
  %s3 = inlined_call_operand.hbm [shape: f32[32,96], index: 3, kind: input, shape index: {}]
  %s4 = inlined_call_operand.vmem [shape: f32[1,96], index: 4, kind: input, shape index: {}]
  %s5 = inlined_call_operand.hbm [shape: f32[32,32], index: 5, kind: input, shape index: {}]
  %s6 = inlined_call_operand.vmem [shape: f32[1,32], index: 6, kind: input, shape index: {}]
  %s7 = inlined_call_operand.hbm [shape: f32[2,8,32], index: 7, kind: output, shape index: {}]
  %s8 = sld [smem:[#allocation0]]
  $region73: #{tpu_custom_call.1} parent=0
    _
  %s10 = ssub.s32 1, %s8
  %s11 = scalar_select 0, %s10, %s8
  $region1: #{tpu_custom_call.1} parent=0
    #allocation2 [shape = 'u8[8192]{0}', space=vmem, size = 0x2000, scoped, tag = 'input window, operand 0']
    #allocation3 [shape = 's32[2]{0}', space=sflag, size = 0x8, scoped, tag = 'scoped memory for tpu_custom_call.1']
    #allocation4 [shape = 's32[2]{0}', space=sflag, size = 0x8, scoped, tag = 'scoped memory for tpu_custom_call.1']
    #allocation5 [shape = 'u8[16384]{0}', space=vmem, size = 0x4000, scoped, tag = 'input window, operand 3, single buffered']
    #allocation6 [shape = 's32[1]{0}', space=sflag, size = 0x4, scoped, tag = 'scoped memory for tpu_custom_call.1']
    #allocation7 [shape = 'u8[16384]{0}', space=vmem, size = 0x4000, scoped, tag = 'input window, operand 5, single buffered']
    #allocation8 [shape = 'u8[8192]{0}', space=vmem, size = 0x2000, scoped, tag = 'output window, operand 0']
    %12 = vsyncpa [#allocation3], 0
    %s13 = scalar_lea.sflag [#allocation3], 1
    %14 = vsyncpa %s13, 0
    %15 = vsyncpa [#allocation6], 0
    %16 = vsyncpa [#allocation4], 0
    %s17 = scalar_lea.sflag [#allocation4], 1
    %18 = vsyncpa %s17, 0
    loop: start=0, step=1, limit=4
    $region2: #{tpu_custom_call.1} parent=1 // loop_pre_header
      _
    $region3: #{tpu_custom_call.1} parent=1 // loop_header
      %s20 = sphi 0, %s24
      %p21 = scmp.ge.s32.totalorder %s20, 4
      %s30 = sphi 0, %s32
      %s33 = sphi 0, %s30
      %s34 = sphi 0, %s33
      %s50 = sphi 0, %s34
      %s54 = sphi 0, %s54
      %s56 = sphi 0, %s54
      %s57 = sphi 0, %s56
      %s71 = sphi 0, %s57
      %s75 = sphi 0, %s75
      %s77 = sphi 0, %s75
      %s78 = sphi 0, %s77
      %s92 = sphi 0, %s78
      %s96 = sphi 0, %s96
      %s98 = sphi 0, %s96
      %s99 = sphi 0, %s98
      %s113 = sphi 0, %s99
      %s117 = sphi 0, %s117
      %s119 = sphi 0, %s117
      %s120 = sphi 0, %s119
      %s134 = sphi 0, %s120
      %s138 = sphi 0, %s138
      %s140 = sphi 0, %s138
      %s141 = sphi 0, %s140
      %s155 = sphi 0, %s141
      %s159 = sphi 0, %s159
      %s161 = sphi 0, %s159
      %s162 = sphi 0, %s161
      %s176 = sphi 0, %s162
      %s182 = sphi 0, %s184
      %s185 = sphi 0, %s182
      %s186 = sphi 0, %s185
      %s202 = sphi 0, %s186
    $region4: #{tpu_custom_call.1} parent=1 // loop_header_branch
      %23 = sbr.rel (%p21) target = $region8
    $region5: #{tpu_custom_call.1} parent=1 // loop_body
      %s25 = ssub.s32 %s20, 1
      %s26 = ssub.s32 %s20, 2
      %s27 = sadd.s32 %s20, 1
      %s28 = ssub.s32 %s20, %s27
      %p29 = scmp.eq.s32.totalorder %s28, 0
      %s31 = sadd.s32 %s30, 1
      %s32 = scalar_select %p29, %s30, %s31
      %p35 = pneg %p29
      %p36 = scmp.eq.s32.totalorder %s20, 1
      %p37 = por %p35, %p36
      %p38 = scmp.ne.s32.totalorder %s30, %s33
      %p39 = scmp.eq.s32.totalorder %s20, 0
      %p40 = por %p38, %p39
      %p41 = scmp.ne.s32.totalorder %s30, %s33
      %p42 = scmp.eq.s32.totalorder %s25, 1
      %p43 = por %p41, %p42
      %p44 = scmp.ne.s32.totalorder %s33, %s34
      %p45 = scmp.eq.s32.totalorder %s25, 0
      %p46 = por %p44, %p45
      %p47 = scmp.ne.s32.totalorder %s33, %s34
      %p48 = scmp.eq.s32.totalorder %s26, 1
      %p49 = por %p47, %p48
      %p51 = scmp.ne.s32.totalorder %s34, %s50
      %p52 = scmp.eq.s32.totalorder %s26, 0
      %p53 = por %p51, %p52
      %s55 = sadd.s32 %s54, 1
      %p58 = scmp.eq.s32.totalorder %s20, 1
      %p59 = scmp.ne.s32.totalorder %s54, %s56
      %p60 = scmp.eq.s32.totalorder %s20, 0
      %p61 = por %p59, %p60
      %p62 = scmp.ne.s32.totalorder %s54, %s56
      %p63 = scmp.eq.s32.totalorder %s25, 1
      %p64 = por %p62, %p63
      %p65 = scmp.ne.s32.totalorder %s56, %s57
      %p66 = scmp.eq.s32.totalorder %s25, 0
      %p67 = por %p65, %p66
      %p68 = scmp.ne.s32.totalorder %s56, %s57
      %p69 = scmp.eq.s32.totalorder %s26, 1
      %p70 = por %p68, %p69
      %p72 = scmp.ne.s32.totalorder %s57, %s71
      %p73 = scmp.eq.s32.totalorder %s26, 0
      %p74 = por %p72, %p73
      %s76 = sadd.s32 %s75, 1
      %p79 = scmp.eq.s32.totalorder %s20, 1
      %p80 = scmp.ne.s32.totalorder %s75, %s77
      %p81 = scmp.eq.s32.totalorder %s20, 0
      %p82 = por %p80, %p81
      %p83 = scmp.ne.s32.totalorder %s75, %s77
      %p84 = scmp.eq.s32.totalorder %s25, 1
      %p85 = por %p83, %p84
      %p86 = scmp.ne.s32.totalorder %s77, %s78
      %p87 = scmp.eq.s32.totalorder %s25, 0
      %p88 = por %p86, %p87
      %p89 = scmp.ne.s32.totalorder %s77, %s78
      %p90 = scmp.eq.s32.totalorder %s26, 1
      %p91 = por %p89, %p90
      %p93 = scmp.ne.s32.totalorder %s78, %s92
      %p94 = scmp.eq.s32.totalorder %s26, 0
      %p95 = por %p93, %p94
      %s97 = sadd.s32 %s96, 1
      %p100 = scmp.eq.s32.totalorder %s20, 1
      %p101 = scmp.ne.s32.totalorder %s96, %s98
      %p102 = scmp.eq.s32.totalorder %s20, 0
      %p103 = por %p101, %p102
      %p104 = scmp.ne.s32.totalorder %s96, %s98
      %p105 = scmp.eq.s32.totalorder %s25, 1
      %p106 = por %p104, %p105
      %p107 = scmp.ne.s32.totalorder %s98, %s99
      %p108 = scmp.eq.s32.totalorder %s25, 0
      %p109 = por %p107, %p108
      %p110 = scmp.ne.s32.totalorder %s98, %s99
      %p111 = scmp.eq.s32.totalorder %s26, 1
      %p112 = por %p110, %p111
      %p114 = scmp.ne.s32.totalorder %s99, %s113
      %p115 = scmp.eq.s32.totalorder %s26, 0
      %p116 = por %p114, %p115
      %s118 = sadd.s32 %s117, 1
      %p121 = scmp.eq.s32.totalorder %s20, 1
      %p122 = scmp.ne.s32.totalorder %s117, %s119
      %p123 = scmp.eq.s32.totalorder %s20, 0
      %p124 = por %p122, %p123
      %p125 = scmp.ne.s32.totalorder %s117, %s119
      %p126 = scmp.eq.s32.totalorder %s25, 1
      %p127 = por %p125, %p126
      %p128 = scmp.ne.s32.totalorder %s119, %s120
      %p129 = scmp.eq.s32.totalorder %s25, 0
      %p130 = por %p128, %p129
      %p131 = scmp.ne.s32.totalorder %s119, %s120
      %p132 = scmp.eq.s32.totalorder %s26, 1
      %p133 = por %p131, %p132
      %p135 = scmp.ne.s32.totalorder %s120, %s134
      %p136 = scmp.eq.s32.totalorder %s26, 0
      %p137 = por %p135, %p136
      %s139 = sadd.s32 %s138, 1
      %p142 = scmp.eq.s32.totalorder %s20, 1
      %p143 = scmp.ne.s32.totalorder %s138, %s140
      %p144 = scmp.eq.s32.totalorder %s20, 0
      %p145 = por %p143, %p144
      %p146 = scmp.ne.s32.totalorder %s138, %s140
      %p147 = scmp.eq.s32.totalorder %s25, 1
      %p148 = por %p146, %p147
      %p149 = scmp.ne.s32.totalorder %s140, %s141
      %p150 = scmp.eq.s32.totalorder %s25, 0
      %p151 = por %p149, %p150
      %p152 = scmp.ne.s32.totalorder %s140, %s141
      %p153 = scmp.eq.s32.totalorder %s26, 1
      %p154 = por %p152, %p153
      %p156 = scmp.ne.s32.totalorder %s141, %s155
      %p157 = scmp.eq.s32.totalorder %s26, 0
      %p158 = por %p156, %p157
      %s160 = sadd.s32 %s159, 1
      %p163 = scmp.eq.s32.totalorder %s20, 1
      %p164 = scmp.ne.s32.totalorder %s159, %s161
      %p165 = scmp.eq.s32.totalorder %s20, 0
      %p166 = por %p164, %p165
      %p167 = scmp.ne.s32.totalorder %s159, %s161
      %p168 = scmp.eq.s32.totalorder %s25, 1
      %p169 = por %p167, %p168
      %p170 = scmp.ne.s32.totalorder %s161, %s162
      %p171 = scmp.eq.s32.totalorder %s25, 0
      %p172 = por %p170, %p171
      %p173 = scmp.ne.s32.totalorder %s161, %s162
      %p174 = scmp.eq.s32.totalorder %s26, 1
      %p175 = por %p173, %p174
      %p177 = scmp.ne.s32.totalorder %s162, %s176
      %p178 = scmp.eq.s32.totalorder %s26, 0
      %p179 = por %p177, %p178
      %s180 = ssub.s32 %s20, %s27
      %p181 = scmp.eq.s32.totalorder %s180, 0
      %s183 = sadd.s32 %s182, 1
      %s184 = scalar_select %p181, %s182, %s183
      %p187 = pneg %p181
      %p188 = scmp.eq.s32.totalorder %s20, 1
      %p189 = por %p187, %p188
      %p190 = scmp.ne.s32.totalorder %s182, %s185
      %p191 = scmp.eq.s32.totalorder %s20, 0
      %p192 = por %p190, %p191
      %p193 = scmp.ne.s32.totalorder %s182, %s185
      %p194 = scmp.eq.s32.totalorder %s25, 1
      %p195 = por %p193, %p194
      %p196 = scmp.ne.s32.totalorder %s185, %s186
      %p197 = scmp.eq.s32.totalorder %s25, 0
      %p198 = por %p196, %p197
      %p199 = scmp.ne.s32.totalorder %s185, %s186
      %p200 = scmp.eq.s32.totalorder %s26, 1
      %p201 = por %p199, %p200
      %p203 = scmp.ne.s32.totalorder %s186, %s202
      %p204 = scmp.eq.s32.totalorder %s26, 0
      %p205 = por %p203, %p204
      %p206 = scmp.le.s32.totalorder 1, %s20
      %p207 = scmp.lt.s32.totalorder %s20, 3
      %p208 = pnand %p206, %p207
      %p209 = pneg %p208
      // Predicated region
      $region9: #{tpu_custom_call.1} parent=5 // pred_check
        _
      $region10: #{tpu_custom_call.1} parent=5 // pred_check_branch
        %211 = sbr.rel (%p208) target = $region12
      $region11: #{tpu_custom_call.1} parent=5 // pred_region
        %s212 = ssub.s32 %s20, 1
        // Predicated region
        $region13: #{tpu_custom_call.1} parent=11 // pred_check
          %p213 = pneg %p67
        $region14: #{tpu_custom_call.1} parent=11 // pred_check_branch
          %215 = sbr.rel (%p213) target = $region16
        $region15: #{tpu_custom_call.1} parent=11 // pred_region
          _
        $region16: #{tpu_custom_call.1} parent=11 // pred_fallthru
          _
        // Predicated region
        $region17: #{tpu_custom_call.1} parent=11 // pred_check
          %p216 = pneg %p88
        $region18: #{tpu_custom_call.1} parent=11 // pred_check_branch
          %218 = sbr.rel (%p216) target = $region20
        $region19: #{tpu_custom_call.1} parent=11 // pred_region
          _
        $region20: #{tpu_custom_call.1} parent=11 // pred_fallthru
          _
        // Predicated region
        $region21: #{tpu_custom_call.1} parent=11 // pred_check
          %p219 = pneg %p109
        $region22: #{tpu_custom_call.1} parent=11 // pred_check_branch
          %221 = sbr.rel (%p219) target = $region24
        $region23: #{tpu_custom_call.1} parent=11 // pred_region
          %s223 = ssub.s32 512, 512
          %224 = vsyncadd [#allocation6], %s223
          %s225 = sshll.u32 [#allocation5], 4
          %s226 = int_to_ptr.vmem [resolvable:$true] %s225
          %231 = dma.hbm_to_vmem [thread:$0]  %s3, 512, %s226, [#allocation6], 128, 128, 8
        $region24: #{tpu_custom_call.1} parent=11 // pred_fallthru
          _
        // Predicated region
        $region25: #{tpu_custom_call.1} parent=11 // pred_check
          %p232 = pneg %p130
        $region26: #{tpu_custom_call.1} parent=11 // pred_check_branch
          %234 = sbr.rel (%p232) target = $region28
        $region27: #{tpu_custom_call.1} parent=11 // pred_region
          _
        $region28: #{tpu_custom_call.1} parent=11 // pred_fallthru
          _
        // Predicated region
        $region29: #{tpu_custom_call.1} parent=11 // pred_check
          %p235 = pneg %p151
        $region30: #{tpu_custom_call.1} parent=11 // pred_check_branch
          %237 = sbr.rel (%p235) target = $region32
        $region31: #{tpu_custom_call.1} parent=11 // pred_region
          %s239 = ssub.s32 512, 512
          %240 = vsyncadd [#allocation6], %s239
          %s241 = sshll.u32 [#allocation7], 4
          %s242 = int_to_ptr.vmem [resolvable:$true] %s241
          %247 = dma.hbm_to_vmem [thread:$0]  %s5, 512, %s242, [#allocation6], 128, 128, 8
        $region32: #{tpu_custom_call.1} parent=11 // pred_fallthru
          _
        // Predicated region
        $region33: #{tpu_custom_call.1} parent=11 // pred_check
          %p248 = pneg %p172
        $region34: #{tpu_custom_call.1} parent=11 // pred_check_branch
          %250 = sbr.rel (%p248) target = $region36
        $region35: #{tpu_custom_call.1} parent=11 // pred_region
          _
        $region36: #{tpu_custom_call.1} parent=11 // pred_fallthru
          _
      $region12: #{tpu_custom_call.1} parent=5 // pred_fallthru
        _
      %p251 = scmp.lt.s32.totalorder %s20, 2
      // Predicated region
      $region37: #{tpu_custom_call.1} parent=5 // pred_check
        %p252 = pneg %p251
      $region38: #{tpu_custom_call.1} parent=5 // pred_check_branch
        %254 = sbr.rel (%p252) target = $region40
      $region39: #{tpu_custom_call.1} parent=5 // pred_region
        // Predicated region
        $region41: #{tpu_custom_call.1} parent=39 // pred_check
          %p255 = pneg %p40
        $region42: #{tpu_custom_call.1} parent=39 // pred_check_branch
          %257 = sbr.rel (%p255) target = $region44
        $region43: #{tpu_custom_call.1} parent=39 // pred_region
          %s258 = sand.u32 %s30, 1
          %s259 = scalar_lea.sflag [#allocation3], %s258
          %s260 = sand.u32 %s30, 1
          %s261 = smul.addr %s260, 8
          %s262 = scalar_lea.vmem [#allocation2], %s261
          %s264 = ssub.s32 128, 128
          %265 = vsyncadd %s259, %s264
          %s266 = smul.addr %s20, 128
          %s267 = scalar_lea.hbm %s0, %s266
          %s269 = sshll.u32 %s262, 4
          %s270 = int_to_ptr.vmem [resolvable:$true] %s269
          %272 = dma.hbm_to_vmem [thread:$0]  %s267, 128, %s270, %s259
        $region44: #{tpu_custom_call.1} parent=39 // pred_fallthru
          _
      $region40: #{tpu_custom_call.1} parent=5 // pred_fallthru
        _
      %p273 = scmp.le.s32.totalorder 1, %s20
      %p274 = scmp.lt.s32.totalorder %s20, 3
      %p275 = pnand %p273, %p274
      %p276 = pneg %p275
      // Predicated region
      $region45: #{tpu_custom_call.1} parent=5 // pred_check
        _
      $region46: #{tpu_custom_call.1} parent=5 // pred_check_branch
        %278 = sbr.rel (%p275) target = $region48
      $region47: #{tpu_custom_call.1} parent=5 // pred_region
        %s279 = ssub.s32 %s20, 1
        %s280 = sand.u32 %s33, 1
        %s281 = scalar_lea.sflag [#allocation3], %s280
        %s282 = sand.u32 %s33, 1
        %s283 = smul.addr %s282, 8
        %s284 = scalar_lea.vmem [#allocation2], %s283
        // Predicated region
        $region49: #{tpu_custom_call.1} parent=47 // pred_check
          %p285 = pneg %p46
        $region50: #{tpu_custom_call.1} parent=47 // pred_check_branch
          %287 = sbr.rel (%p285) target = $region52
        $region51: #{tpu_custom_call.1} parent=47 // pred_region
          %288 = dma.done %s281, 128
        $region52: #{tpu_custom_call.1} parent=47 // pred_fallthru
          _
        // Predicated region
        $region53: #{tpu_custom_call.1} parent=47 // pred_check
          %p289 = pneg %p109
        $region54: #{tpu_custom_call.1} parent=47 // pred_check_branch
          %291 = sbr.rel (%p289) target = $region56
        $region55: #{tpu_custom_call.1} parent=47 // pred_region
          %292 = dma.done [#allocation6], 512
        $region56: #{tpu_custom_call.1} parent=47 // pred_fallthru
          _
        // Predicated region
        $region57: #{tpu_custom_call.1} parent=47 // pred_check
          %p293 = pneg %p151
        $region58: #{tpu_custom_call.1} parent=47 // pred_check_branch
          %295 = sbr.rel (%p293) target = $region60
        $region59: #{tpu_custom_call.1} parent=47 // pred_region
          %296 = dma.done [#allocation6], 512
        $region60: #{tpu_custom_call.1} parent=47 // pred_fallthru
          _
        %s297 = sand.u32 %s33, 1
        %s298 = scalar_lea.sflag [#allocation3], %s297
        %s299 = sand.u32 %s33, 1
        %s300 = smul.addr %s299, 8
        %s301 = scalar_lea.vmem [#allocation2], %s300
        %p302 = pneg %p46
        %p303 = pneg %p43
        %p304 = pneg %p67
        %p305 = pneg %p64
        %p306 = pneg %p88
        %p307 = pneg %p85
        %p308 = pneg %p109
        %p309 = pneg %p106
        %p310 = pneg %p130
        %p311 = pneg %p127
        %p312 = pneg %p151
        %p313 = pneg %p148
        %p314 = pneg %p172
        %p315 = pneg %p169
        %p316 = pneg %p198
        %p317 = pneg %p195
        %s318 = sand.u32 %s185, 1
        %s319 = scalar_lea.sflag [#allocation4], %s318
        %s320 = sand.u32 %s185, 1
        %s321 = smul.addr %s320, 8
        %s322 = scalar_lea.vmem [#allocation8], %s321
        %v323 = vld [vmem:[%s284] sm:$0xff]
        %vm324 = vcmask 261120
        %v325 = vsel %vm324, %v323, 0.0
        %326 = vadd.xlane.f32.xlu0 %v325
        %v327 = vpop.xlane.xlu0 %326
        %v328 = vrcp.pop 32.0
        %v329 = vmul.f32 %v327, %v328
        %v330 = vsub.f32 %v323, %v329
        %v331 = vmul.f32 %v330, %v330
        %v332 = vsel %vm324, %v331, 0.0
        %333 = vadd.xlane.f32.xlu0 %v332
        %v334 = vpop.xlane.xlu0 %333
        %v335 = vmul.f32 %v334, %v328
        %v336 = vadd.f32 %v335, 1e-05
        %v337 = vrsqrt.pop %v336
        %v338 = vmul.f32 %v330, %v337
        %v339 = vld [vmem:[%s1] sm:$0x1]
        %v341 = vlaneseq
        %v342 = vshrl.u32 %v341, 7
        %v343 = vsub.s32 0, %v342
        %v344 = vrot.slane %v339, %v343
        %v346 = vmul.f32 %v338, %v344
        %v347 = vld [vmem:[%s2] sm:$0x1]
        %v349 = vlaneseq
        %v350 = vshrl.u32 %v349, 7
        %v351 = vsub.s32 0, %v350
        %v352 = vrot.slane %v347, %v351
        %v354 = vadd.f32 %v346, %v352
        %v355 = vld [vmem:[#allocation5] sm:$0xff]
        %v356 = vld [vmem:[#allocation5 + $0x8] sm:$0xff]
        %v357 = vld [vmem:[#allocation5 + $0x10] sm:$0xff]
        %v358 = vld [vmem:[#allocation5 + $0x18] sm:$0xff]
        %v359 = vld [vmem:[%s4] sm:$0x1]
        %v361 = vlaneseq
        %v362 = vshrl.u32 %v361, 7
        %v363 = vsub.s32 0, %v362
        %v364 = vrot.slane %v359, %v363
        %v367 = vsel %vm324, %v354, 0
        %369 = vmatprep.subr.mxu0 0.0
        %370 = vmatpush1.msra.mxu0 %v355
        %371 = vmatprep.subr.mxu0 0.0
        %372 = vmatpush1.msra.mxu0 %v356
        %373 = vmatprep.subr.mxu0 0.0
        %374 = vmatpush1.msra.mxu0 %v357
        %375 = vmatprep.subr.mxu0 0.0
        %376 = vmatpush1.msra.mxu0 %v358
        %377 = vmatprep.subr.mxu0 0.0
        %378 = vmatpush1.msra.mxu0 0.0
        %379 = vmatprep.subr.mxu0 0.0
        %380 = vmatpush1.msra.mxu0 0.0
        %381 = vmatprep.subr.mxu0 0.0
        %382 = vmatpush1.msra.mxu0 0.0
        %383 = vmatprep.subr.mxu0 0.0
        %384 = vmatpush1.msra.mxu0 0.0
        %385 = vmatprep.subr.mxu0 0.0
        %386 = vmatpush1.msra.mxu0 0.0
        %387 = vmatprep.subr.mxu0 0.0
        %388 = vmatpush1.msra.mxu0 0.0
        %389 = vmatprep.subr.mxu0 0.0
        %390 = vmatpush1.msra.mxu0 0.0
        %391 = vmatprep.subr.mxu0 0.0
        %392 = vmatpush1.msra.mxu0 0.0
        %393 = vmatprep.subr.mxu0 0.0
        %394 = vmatpush1.msra.mxu0 0.0
        %395 = vmatprep.subr.mxu0 0.0
        %396 = vmatpush1.msra.mxu0 0.0
        %397 = vmatprep.subr.mxu0 0.0
        %398 = vmatpush1.msra.mxu0 0.0
        %399 = vmatprep.subr.mxu0 0.0
        %400 = vmatpush1.msra.mxu0 0.0
        %401 = vmatprep.subr.mxu0 0.0
        %402 = vmatpush1.msra.mxu0 0.0
        %403 = vmatprep.subr.mxu0 0.0
        %404 = vmatpush1.msra.mxu0 0.0
        %405 = vmatprep.subr.mxu0 0.0
        %406 = vmatpush1.msra.mxu0 0.0
        %407 = vmatprep.subr.mxu0 0.0
        %408 = vmatpush1.msra.mxu0 0.0
        %409 = vmatprep.subr.mxu0 0.0
        %410 = vmatpush1.msra.mxu0 0.0
        %411 = vmatprep.subr.mxu0 0.0
        %412 = vmatpush1.msra.mxu0 0.0
        %413 = vmatprep.subr.mxu0 0.0
        %414 = vmatpush1.msra.mxu0 0.0
        %415 = vmatprep.subr.mxu0 0.0
        %416 = vmatpush1.msra.mxu0 0.0
        %417 = vmatprep.subr.mxu0 0.0
        %418 = vmatpush1.msra.mxu0 0.0
        %419 = vmatprep.subr.mxu0 0.0
        %420 = vmatpush1.msra.mxu0 0.0
        %421 = vmatprep.subr.mxu0 0.0
        %422 = vmatpush1.msra.mxu0 0.0
        %423 = vmatprep.subr.mxu0 0.0
        %424 = vmatpush1.msra.mxu0 0.0
        %425 = vmatprep.subr.mxu0 0.0
        %426 = vmatpush1.msra.mxu0 0.0
        %427 = vmatprep.subr.mxu0 0.0
        %428 = vmatpush1.msra.mxu0 0.0
        %429 = vmatprep.subr.mxu0 0.0
        %430 = vmatpush1.msra.mxu0 0.0
        %431 = vmatprep.subr.mxu0 0.0
        %432 = vmatpush1.msra.mxu0 0.0
        %433 = vmatprep.mubr.f32.mxu0 0.0
        %434 = vmatmul.mubr.f32.gmra.mrb[0].mxu0 %v367
        %v435 = vpop.f32.mrb[0].mxu0
        %v436 = vadd.f32 %v364, %v435
        %v437 = vpop.f32.mrb[0].mxu0
        %438 = vdwg.mxu0
        %440 = vrot.lane.b32.xlu0 %v436, 96
        %v441 = vpop.permute.xlu0 %440
        %vm442 = vcmask 64512
        %v443 = vsel %vm442, %v436, 0
        %v445 = vsel %vm442, %v441, 0
        %447 = vmatprep.subr.mxu0 0.0
        %448 = vmatpush1.xpose.msra.mxu0 %v445
        %449 = vmatprep.subr.mxu0 0.0
        %450 = vmatpush1.xpose.msra.mxu0 0.0
        %451 = vmatprep.subr.mxu0 0.0
        %452 = vmatpush1.xpose.msra.mxu0 0.0
        %453 = vmatprep.subr.mxu0 0.0
        %454 = vmatpush1.xpose.msra.mxu0 0.0
        %455 = vmatprep.subr.mxu0 0.0
        %456 = vmatpush1.xpose.msra.mxu0 0.0
        %457 = vmatprep.subr.mxu0 0.0
        %458 = vmatpush1.xpose.msra.mxu0 0.0
        %459 = vmatprep.subr.mxu0 0.0
        %460 = vmatpush1.xpose.msra.mxu0 0.0
        %461 = vmatprep.subr.mxu0 0.0
        %462 = vmatpush1.xpose.msra.mxu0 0.0
        %463 = vmatprep.subr.mxu0 0.0
        %464 = vmatpush1.xpose.msra.mxu0 0.0
        %465 = vmatprep.subr.mxu0 0.0
        %466 = vmatpush1.xpose.msra.mxu0 0.0
        %467 = vmatprep.subr.mxu0 0.0
        %468 = vmatpush1.xpose.msra.mxu0 0.0
        %469 = vmatprep.subr.mxu0 0.0
        %470 = vmatpush1.xpose.msra.mxu0 0.0
        %471 = vmatprep.subr.mxu0 0.0
        %472 = vmatpush1.xpose.msra.mxu0 0.0
        %473 = vmatprep.subr.mxu0 0.0
        %474 = vmatpush1.xpose.msra.mxu0 0.0
        %475 = vmatprep.subr.mxu0 0.0
        %476 = vmatpush1.xpose.msra.mxu0 0.0
        %477 = vmatprep.subr.mxu0 0.0
        %478 = vmatpush1.xpose.msra.mxu0 0.0
        %479 = vmatprep.subr.mxu0 0.0
        %480 = vmatpush1.xpose.msra.mxu0 0.0
        %481 = vmatprep.subr.mxu0 0.0
        %482 = vmatpush1.xpose.msra.mxu0 0.0
        %483 = vmatprep.subr.mxu0 0.0
        %484 = vmatpush1.xpose.msra.mxu0 0.0
        %485 = vmatprep.subr.mxu0 0.0
        %486 = vmatpush1.xpose.msra.mxu0 0.0
        %487 = vmatprep.subr.mxu0 0.0
        %488 = vmatpush1.xpose.msra.mxu0 0.0
        %489 = vmatprep.subr.mxu0 0.0
        %490 = vmatpush1.xpose.msra.mxu0 0.0
        %491 = vmatprep.subr.mxu0 0.0
        %492 = vmatpush1.xpose.msra.mxu0 0.0
        %493 = vmatprep.subr.mxu0 0.0
        %494 = vmatpush1.xpose.msra.mxu0 0.0
        %495 = vmatprep.subr.mxu0 0.0
        %496 = vmatpush1.xpose.msra.mxu0 0.0
        %497 = vmatprep.subr.mxu0 0.0
        %498 = vmatpush1.xpose.msra.mxu0 0.0
        %499 = vmatprep.subr.mxu0 0.0
        %500 = vmatpush1.xpose.msra.mxu0 0.0
        %501 = vmatprep.subr.mxu0 0.0
        %502 = vmatpush1.xpose.msra.mxu0 0.0
        %503 = vmatprep.subr.mxu0 0.0
        %504 = vmatpush1.xpose.msra.mxu0 0.0
        %505 = vmatprep.subr.mxu0 0.0
        %506 = vmatpush1.xpose.msra.mxu0 0.0
        %507 = vmatprep.subr.mxu0 0.0
        %508 = vmatpush1.xpose.msra.mxu0 0.0
        %509 = vmatprep.subr.mxu0 0.0
        %510 = vmatpush1.xpose.msra.mxu0 0.0
        %511 = vmatprep.mubr.f32.mxu0 0.0
        %512 = vmatmul.mubr.f32.gmra.mrb[0].mxu0 %v443
        %v513 = vpop.f32.mrb[0].mxu0
        %v514 = vadd.f32 0.0, %v513
        %v515 = vpop.f32.mrb[0].mxu0
        %516 = vdwg.mxu0
        %v517 = vsel %vm442, %v514, -inf
        %518 = vmax.xlane.f32.xlu0 %v517
        %v519 = vpop.xlane.xlu0 %518
        %v520 = vsub.f32 %v514, %v519
        %v521 = vmul.f32 %v520, 1.442695
        %v522 = vpow.pop %v521
        %v523 = vsel %vm442, %v522, 0.0
        %524 = vadd.xlane.f32.xlu0 %v523
        %v525 = vpop.xlane.xlu0 %524
        %v526 = vrcp.pop %v525
        %v527 = vmul.f32 %v522, %v526
        %528 = vrot.lane.b32.xlu0 %v436, 64
        %v529 = vpop.permute.xlu0 %528
        %v532 = vsel %vm442, %v527, 0
        %534 = vmatprep.subr.mxu0 0.0
        %535 = vmatpush1.msra.mxu0 %v529
        %536 = vmatprep.subr.mxu0 0.0
        %537 = vmatpush1.msra.mxu0 0.0
        %538 = vmatprep.subr.mxu0 0.0
        %539 = vmatpush1.msra.mxu0 0.0
        %540 = vmatprep.subr.mxu0 0.0
        %541 = vmatpush1.msra.mxu0 0.0
        %542 = vmatprep.subr.mxu0 0.0
        %543 = vmatpush1.msra.mxu0 0.0
        %544 = vmatprep.subr.mxu0 0.0
        %545 = vmatpush1.msra.mxu0 0.0
        %546 = vmatprep.subr.mxu0 0.0
        %547 = vmatpush1.msra.mxu0 0.0
        %548 = vmatprep.subr.mxu0 0.0
        %549 = vmatpush1.msra.mxu0 0.0
        %550 = vmatprep.subr.mxu0 0.0
        %551 = vmatpush1.msra.mxu0 0.0
        %552 = vmatprep.subr.mxu0 0.0
        %553 = vmatpush1.msra.mxu0 0.0
        %554 = vmatprep.subr.mxu0 0.0
        %555 = vmatpush1.msra.mxu0 0.0
        %556 = vmatprep.subr.mxu0 0.0
        %557 = vmatpush1.msra.mxu0 0.0
        %558 = vmatprep.subr.mxu0 0.0
        %559 = vmatpush1.msra.mxu0 0.0
        %560 = vmatprep.subr.mxu0 0.0
        %561 = vmatpush1.msra.mxu0 0.0
        %562 = vmatprep.subr.mxu0 0.0
        %563 = vmatpush1.msra.mxu0 0.0
        %564 = vmatprep.subr.mxu0 0.0
        %565 = vmatpush1.msra.mxu0 0.0
        %566 = vmatprep.subr.mxu0 0.0
        %567 = vmatpush1.msra.mxu0 0.0
        %568 = vmatprep.subr.mxu0 0.0
        %569 = vmatpush1.msra.mxu0 0.0
        %570 = vmatprep.subr.mxu0 0.0
        %571 = vmatpush1.msra.mxu0 0.0
        %572 = vmatprep.subr.mxu0 0.0
        %573 = vmatpush1.msra.mxu0 0.0
        %574 = vmatprep.subr.mxu0 0.0
        %575 = vmatpush1.msra.mxu0 0.0
        %576 = vmatprep.subr.mxu0 0.0
        %577 = vmatpush1.msra.mxu0 0.0
        %578 = vmatprep.subr.mxu0 0.0
        %579 = vmatpush1.msra.mxu0 0.0
        %580 = vmatprep.subr.mxu0 0.0
        %581 = vmatpush1.msra.mxu0 0.0
        %582 = vmatprep.subr.mxu0 0.0
        %583 = vmatpush1.msra.mxu0 0.0
        %584 = vmatprep.subr.mxu0 0.0
        %585 = vmatpush1.msra.mxu0 0.0
        %586 = vmatprep.subr.mxu0 0.0
        %587 = vmatpush1.msra.mxu0 0.0
        %588 = vmatprep.subr.mxu0 0.0
        %589 = vmatpush1.msra.mxu0 0.0
        %590 = vmatprep.subr.mxu0 0.0
        %591 = vmatpush1.msra.mxu0 0.0
        %592 = vmatprep.subr.mxu0 0.0
        %593 = vmatpush1.msra.mxu0 0.0
        %594 = vmatprep.subr.mxu0 0.0
        %595 = vmatpush1.msra.mxu0 0.0
        %596 = vmatprep.subr.mxu0 0.0
        %597 = vmatpush1.msra.mxu0 0.0
        %598 = vmatprep.mubr.f32.mxu0 0.0
        %599 = vmatmul.mubr.f32.gmra.mrb[0].mxu0 %v532
        %v600 = vpop.f32.mrb[0].mxu0
        %v601 = vadd.f32 0.0, %v600
        %v602 = vpop.f32.mrb[0].mxu0
        %603 = vdwg.mxu0
        %604 = vrot.lane.b32.xlu0 %v436, 120
        %v605 = vpop.permute.xlu0 %604
        %606 = vrot.lane.b32.xlu0 %v436, 88
        %v607 = vpop.permute.xlu0 %606
        %v608 = vsel %vm442, %v605, 0
        %v610 = vsel %vm442, %v607, 0
        %612 = vmatprep.subr.mxu0 0.0
        %613 = vmatpush1.xpose.msra.mxu0 %v610
        %614 = vmatprep.subr.mxu0 0.0
        %615 = vmatpush1.xpose.msra.mxu0 0.0
        %616 = vmatprep.subr.mxu0 0.0
        %617 = vmatpush1.xpose.msra.mxu0 0.0
        %618 = vmatprep.subr.mxu0 0.0
        %619 = vmatpush1.xpose.msra.mxu0 0.0
        %620 = vmatprep.subr.mxu0 0.0
        %621 = vmatpush1.xpose.msra.mxu0 0.0
        %622 = vmatprep.subr.mxu0 0.0
        %623 = vmatpush1.xpose.msra.mxu0 0.0
        %624 = vmatprep.subr.mxu0 0.0
        %625 = vmatpush1.xpose.msra.mxu0 0.0
        %626 = vmatprep.subr.mxu0 0.0
        %627 = vmatpush1.xpose.msra.mxu0 0.0
        %628 = vmatprep.subr.mxu0 0.0
        %629 = vmatpush1.xpose.msra.mxu0 0.0
        %630 = vmatprep.subr.mxu0 0.0
        %631 = vmatpush1.xpose.msra.mxu0 0.0
        %632 = vmatprep.subr.mxu0 0.0
        %633 = vmatpush1.xpose.msra.mxu0 0.0
        %634 = vmatprep.subr.mxu0 0.0
        %635 = vmatpush1.xpose.msra.mxu0 0.0
        %636 = vmatprep.subr.mxu0 0.0
        %637 = vmatpush1.xpose.msra.mxu0 0.0
        %638 = vmatprep.subr.mxu0 0.0
        %639 = vmatpush1.xpose.msra.mxu0 0.0
        %640 = vmatprep.subr.mxu0 0.0
        %641 = vmatpush1.xpose.msra.mxu0 0.0
        %642 = vmatprep.subr.mxu0 0.0
        %643 = vmatpush1.xpose.msra.mxu0 0.0
        %644 = vmatprep.subr.mxu0 0.0
        %645 = vmatpush1.xpose.msra.mxu0 0.0
        %646 = vmatprep.subr.mxu0 0.0
        %647 = vmatpush1.xpose.msra.mxu0 0.0
        %648 = vmatprep.subr.mxu0 0.0
        %649 = vmatpush1.xpose.msra.mxu0 0.0
        %650 = vmatprep.subr.mxu0 0.0
        %651 = vmatpush1.xpose.msra.mxu0 0.0
        %652 = vmatprep.subr.mxu0 0.0
        %653 = vmatpush1.xpose.msra.mxu0 0.0
        %654 = vmatprep.subr.mxu0 0.0
        %655 = vmatpush1.xpose.msra.mxu0 0.0
        %656 = vmatprep.subr.mxu0 0.0
        %657 = vmatpush1.xpose.msra.mxu0 0.0
        %658 = vmatprep.subr.mxu0 0.0
        %659 = vmatpush1.xpose.msra.mxu0 0.0
        %660 = vmatprep.subr.mxu0 0.0
        %661 = vmatpush1.xpose.msra.mxu0 0.0
        %662 = vmatprep.subr.mxu0 0.0
        %663 = vmatpush1.xpose.msra.mxu0 0.0
        %664 = vmatprep.subr.mxu0 0.0
        %665 = vmatpush1.xpose.msra.mxu0 0.0
        %666 = vmatprep.subr.mxu0 0.0
        %667 = vmatpush1.xpose.msra.mxu0 0.0
        %668 = vmatprep.subr.mxu0 0.0
        %669 = vmatpush1.xpose.msra.mxu0 0.0
        %670 = vmatprep.subr.mxu0 0.0
        %671 = vmatpush1.xpose.msra.mxu0 0.0
        %672 = vmatprep.subr.mxu0 0.0
        %673 = vmatpush1.xpose.msra.mxu0 0.0
        %674 = vmatprep.subr.mxu0 0.0
        %675 = vmatpush1.xpose.msra.mxu0 0.0
        %676 = vmatprep.mubr.f32.mxu0 0.0
        %677 = vmatmul.mubr.f32.gmra.mrb[0].mxu0 %v608
        %v678 = vpop.f32.mrb[0].mxu0
        %v679 = vadd.f32 0.0, %v678
        %v680 = vpop.f32.mrb[0].mxu0
        %681 = vdwg.mxu0
        %v682 = vsel %vm442, %v679, -inf
        %683 = vmax.xlane.f32.xlu0 %v682
        %v684 = vpop.xlane.xlu0 %683
        %v685 = vsub.f32 %v679, %v684
        %v686 = vmul.f32 %v685, 1.442695
        %v687 = vpow.pop %v686
        %v688 = vsel %vm442, %v687, 0.0
        %689 = vadd.xlane.f32.xlu0 %v688
        %v690 = vpop.xlane.xlu0 %689
        %v691 = vrcp.pop %v690
        %v692 = vmul.f32 %v687, %v691
        %693 = vrot.lane.b32.xlu0 %v436, 56
        %v694 = vpop.permute.xlu0 %693
        %v697 = vsel %vm442, %v692, 0
        %699 = vmatprep.subr.mxu0 0.0
        %700 = vmatpush1.msra.mxu0 %v694
        %701 = vmatprep.subr.mxu0 0.0
        %702 = vmatpush1.msra.mxu0 0.0
        %703 = vmatprep.subr.mxu0 0.0
        %704 = vmatpush1.msra.mxu0 0.0
        %705 = vmatprep.subr.mxu0 0.0
        %706 = vmatpush1.msra.mxu0 0.0
        %707 = vmatprep.subr.mxu0 0.0
        %708 = vmatpush1.msra.mxu0 0.0
        %709 = vmatprep.subr.mxu0 0.0
        %710 = vmatpush1.msra.mxu0 0.0
        %711 = vmatprep.subr.mxu0 0.0
        %712 = vmatpush1.msra.mxu0 0.0
        %713 = vmatprep.subr.mxu0 0.0
        %714 = vmatpush1.msra.mxu0 0.0
        %715 = vmatprep.subr.mxu0 0.0
        %716 = vmatpush1.msra.mxu0 0.0
        %717 = vmatprep.subr.mxu0 0.0
        %718 = vmatpush1.msra.mxu0 0.0
        %719 = vmatprep.subr.mxu0 0.0
        %720 = vmatpush1.msra.mxu0 0.0
        %721 = vmatprep.subr.mxu0 0.0
        %722 = vmatpush1.msra.mxu0 0.0
        %723 = vmatprep.subr.mxu0 0.0
        %724 = vmatpush1.msra.mxu0 0.0
        %725 = vmatprep.subr.mxu0 0.0
        %726 = vmatpush1.msra.mxu0 0.0
        %727 = vmatprep.subr.mxu0 0.0
        %728 = vmatpush1.msra.mxu0 0.0
        %729 = vmatprep.subr.mxu0 0.0
        %730 = vmatpush1.msra.mxu0 0.0
        %731 = vmatprep.subr.mxu0 0.0
        %732 = vmatpush1.msra.mxu0 0.0
        %733 = vmatprep.subr.mxu0 0.0
        %734 = vmatpush1.msra.mxu0 0.0
        %735 = vmatprep.subr.mxu0 0.0
        %736 = vmatpush1.msra.mxu0 0.0
        %737 = vmatprep.subr.mxu0 0.0
        %738 = vmatpush1.msra.mxu0 0.0
        %739 = vmatprep.subr.mxu0 0.0
        %740 = vmatpush1.msra.mxu0 0.0
        %741 = vmatprep.subr.mxu0 0.0
        %742 = vmatpush1.msra.mxu0 0.0
        %743 = vmatprep.subr.mxu0 0.0
        %744 = vmatpush1.msra.mxu0 0.0
        %745 = vmatprep.subr.mxu0 0.0
        %746 = vmatpush1.msra.mxu0 0.0
        %747 = vmatprep.subr.mxu0 0.0
        %748 = vmatpush1.msra.mxu0 0.0
        %749 = vmatprep.subr.mxu0 0.0
        %750 = vmatpush1.msra.mxu0 0.0
        %751 = vmatprep.subr.mxu0 0.0
        %752 = vmatpush1.msra.mxu0 0.0
        %753 = vmatprep.subr.mxu0 0.0
        %754 = vmatpush1.msra.mxu0 0.0
        %755 = vmatprep.subr.mxu0 0.0
        %756 = vmatpush1.msra.mxu0 0.0
        %757 = vmatprep.subr.mxu0 0.0
        %758 = vmatpush1.msra.mxu0 0.0
        %759 = vmatprep.subr.mxu0 0.0
        %760 = vmatpush1.msra.mxu0 0.0
        %761 = vmatprep.subr.mxu0 0.0
        %762 = vmatpush1.msra.mxu0 0.0
        %763 = vmatprep.mubr.f32.mxu0 0.0
        %764 = vmatmul.mubr.f32.gmra.mrb[0].mxu0 %v697
        %v765 = vpop.f32.mrb[0].mxu0
        %v766 = vadd.f32 0.0, %v765
        %v767 = vpop.f32.mrb[0].mxu0
        %768 = vdwg.mxu0
        %769 = vrot.lane.b32.xlu0 %v436, 112
        %v770 = vpop.permute.xlu0 %769
        %771 = vrot.lane.b32.xlu0 %v436, 80
        %v772 = vpop.permute.xlu0 %771
        %v773 = vsel %vm442, %v770, 0
        %v775 = vsel %vm442, %v772, 0
        %777 = vmatprep.subr.mxu0 0.0
        %778 = vmatpush1.xpose.msra.mxu0 %v775
        %779 = vmatprep.subr.mxu0 0.0
        %780 = vmatpush1.xpose.msra.mxu0 0.0
        %781 = vmatprep.subr.mxu0 0.0
        %782 = vmatpush1.xpose.msra.mxu0 0.0
        %783 = vmatprep.subr.mxu0 0.0
        %784 = vmatpush1.xpose.msra.mxu0 0.0
        %785 = vmatprep.subr.mxu0 0.0
        %786 = vmatpush1.xpose.msra.mxu0 0.0
        %787 = vmatprep.subr.mxu0 0.0
        %788 = vmatpush1.xpose.msra.mxu0 0.0
        %789 = vmatprep.subr.mxu0 0.0
        %790 = vmatpush1.xpose.msra.mxu0 0.0
        %791 = vmatprep.subr.mxu0 0.0
        %792 = vmatpush1.xpose.msra.mxu0 0.0
        %793 = vmatprep.subr.mxu0 0.0
        %794 = vmatpush1.xpose.msra.mxu0 0.0
        %795 = vmatprep.subr.mxu0 0.0
        %796 = vmatpush1.xpose.msra.mxu0 0.0
        %797 = vmatprep.subr.mxu0 0.0
        %798 = vmatpush1.xpose.msra.mxu0 0.0
        %799 = vmatprep.subr.mxu0 0.0
        %800 = vmatpush1.xpose.msra.mxu0 0.0
        %801 = vmatprep.subr.mxu0 0.0
        %802 = vmatpush1.xpose.msra.mxu0 0.0
        %803 = vmatprep.subr.mxu0 0.0
        %804 = vmatpush1.xpose.msra.mxu0 0.0
        %805 = vmatprep.subr.mxu0 0.0
        %806 = vmatpush1.xpose.msra.mxu0 0.0
        %807 = vmatprep.subr.mxu0 0.0
        %808 = vmatpush1.xpose.msra.mxu0 0.0
        %809 = vmatprep.subr.mxu0 0.0
        %810 = vmatpush1.xpose.msra.mxu0 0.0
        %811 = vmatprep.subr.mxu0 0.0
        %812 = vmatpush1.xpose.msra.mxu0 0.0
        %813 = vmatprep.subr.mxu0 0.0
        %814 = vmatpush1.xpose.msra.mxu0 0.0
        %815 = vmatprep.subr.mxu0 0.0
        %816 = vmatpush1.xpose.msra.mxu0 0.0
        %817 = vmatprep.subr.mxu0 0.0
        %818 = vmatpush1.xpose.msra.mxu0 0.0
        %819 = vmatprep.subr.mxu0 0.0
        %820 = vmatpush1.xpose.msra.mxu0 0.0
        %821 = vmatprep.subr.mxu0 0.0
        %822 = vmatpush1.xpose.msra.mxu0 0.0
        %823 = vmatprep.subr.mxu0 0.0
        %824 = vmatpush1.xpose.msra.mxu0 0.0
        %825 = vmatprep.subr.mxu0 0.0
        %826 = vmatpush1.xpose.msra.mxu0 0.0
        %827 = vmatprep.subr.mxu0 0.0
        %828 = vmatpush1.xpose.msra.mxu0 0.0
        %829 = vmatprep.subr.mxu0 0.0
        %830 = vmatpush1.xpose.msra.mxu0 0.0
        %831 = vmatprep.subr.mxu0 0.0
        %832 = vmatpush1.xpose.msra.mxu0 0.0
        %833 = vmatprep.subr.mxu0 0.0
        %834 = vmatpush1.xpose.msra.mxu0 0.0
        %835 = vmatprep.subr.mxu0 0.0
        %836 = vmatpush1.xpose.msra.mxu0 0.0
        %837 = vmatprep.subr.mxu0 0.0
        %838 = vmatpush1.xpose.msra.mxu0 0.0
        %839 = vmatprep.subr.mxu0 0.0
        %840 = vmatpush1.xpose.msra.mxu0 0.0
        %841 = vmatprep.mubr.f32.mxu0 0.0
        %842 = vmatmul.mubr.f32.gmra.mrb[0].mxu0 %v773
        %v843 = vpop.f32.mrb[0].mxu0
        %v844 = vadd.f32 0.0, %v843
        %v845 = vpop.f32.mrb[0].mxu0
        %846 = vdwg.mxu0
        %v847 = vsel %vm442, %v844, -inf
        %848 = vmax.xlane.f32.xlu0 %v847
        %v849 = vpop.xlane.xlu0 %848
        %v850 = vsub.f32 %v844, %v849
        %v851 = vmul.f32 %v850, 1.442695
        %v852 = vpow.pop %v851
        %v853 = vsel %vm442, %v852, 0.0
        %854 = vadd.xlane.f32.xlu0 %v853
        %v855 = vpop.xlane.xlu0 %854
        %v856 = vrcp.pop %v855
        %v857 = vmul.f32 %v852, %v856
        %858 = vrot.lane.b32.xlu0 %v436, 48
        %v859 = vpop.permute.xlu0 %858
        %v862 = vsel %vm442, %v857, 0
        %864 = vmatprep.subr.mxu0 0.0
        %865 = vmatpush1.msra.mxu0 %v859
        %866 = vmatprep.subr.mxu0 0.0
        %867 = vmatpush1.msra.mxu0 0.0
        %868 = vmatprep.subr.mxu0 0.0
        %869 = vmatpush1.msra.mxu0 0.0
        %870 = vmatprep.subr.mxu0 0.0
        %871 = vmatpush1.msra.mxu0 0.0
        %872 = vmatprep.subr.mxu0 0.0
        %873 = vmatpush1.msra.mxu0 0.0
        %874 = vmatprep.subr.mxu0 0.0
        %875 = vmatpush1.msra.mxu0 0.0
        %876 = vmatprep.subr.mxu0 0.0
        %877 = vmatpush1.msra.mxu0 0.0
        %878 = vmatprep.subr.mxu0 0.0
        %879 = vmatpush1.msra.mxu0 0.0
        %880 = vmatprep.subr.mxu0 0.0
        %881 = vmatpush1.msra.mxu0 0.0
        %882 = vmatprep.subr.mxu0 0.0
        %883 = vmatpush1.msra.mxu0 0.0
        %884 = vmatprep.subr.mxu0 0.0
        %885 = vmatpush1.msra.mxu0 0.0
        %886 = vmatprep.subr.mxu0 0.0
        %887 = vmatpush1.msra.mxu0 0.0
        %888 = vmatprep.subr.mxu0 0.0
        %889 = vmatpush1.msra.mxu0 0.0
        %890 = vmatprep.subr.mxu0 0.0
        %891 = vmatpush1.msra.mxu0 0.0
        %892 = vmatprep.subr.mxu0 0.0
        %893 = vmatpush1.msra.mxu0 0.0
        %894 = vmatprep.subr.mxu0 0.0
        %895 = vmatpush1.msra.mxu0 0.0
        %896 = vmatprep.subr.mxu0 0.0
        %897 = vmatpush1.msra.mxu0 0.0
        %898 = vmatprep.subr.mxu0 0.0
        %899 = vmatpush1.msra.mxu0 0.0
        %900 = vmatprep.subr.mxu0 0.0
        %901 = vmatpush1.msra.mxu0 0.0
        %902 = vmatprep.subr.mxu0 0.0
        %903 = vmatpush1.msra.mxu0 0.0
        %904 = vmatprep.subr.mxu0 0.0
        %905 = vmatpush1.msra.mxu0 0.0
        %906 = vmatprep.subr.mxu0 0.0
        %907 = vmatpush1.msra.mxu0 0.0
        %908 = vmatprep.subr.mxu0 0.0
        %909 = vmatpush1.msra.mxu0 0.0
        %910 = vmatprep.subr.mxu0 0.0
        %911 = vmatpush1.msra.mxu0 0.0
        %912 = vmatprep.subr.mxu0 0.0
        %913 = vmatpush1.msra.mxu0 0.0
        %914 = vmatprep.subr.mxu0 0.0
        %915 = vmatpush1.msra.mxu0 0.0
        %916 = vmatprep.subr.mxu0 0.0
        %917 = vmatpush1.msra.mxu0 0.0
        %918 = vmatprep.subr.mxu0 0.0
        %919 = vmatpush1.msra.mxu0 0.0
        %920 = vmatprep.subr.mxu0 0.0
        %921 = vmatpush1.msra.mxu0 0.0
        %922 = vmatprep.subr.mxu0 0.0
        %923 = vmatpush1.msra.mxu0 0.0
        %924 = vmatprep.subr.mxu0 0.0
        %925 = vmatpush1.msra.mxu0 0.0
        %926 = vmatprep.subr.mxu0 0.0
        %927 = vmatpush1.msra.mxu0 0.0
        %928 = vmatprep.mubr.f32.mxu0 0.0
        %929 = vmatmul.mubr.f32.gmra.mrb[0].mxu0 %v862
        %v930 = vpop.f32.mrb[0].mxu0
        %v931 = vadd.f32 0.0, %v930
        %v932 = vpop.f32.mrb[0].mxu0
        %933 = vdwg.mxu0
        %934 = vrot.lane.b32.xlu0 %v436, 104
        %v935 = vpop.permute.xlu0 %934
        %936 = vrot.lane.b32.xlu0 %v436, 72
        %v937 = vpop.permute.xlu0 %936
        %v938 = vsel %vm442, %v935, 0
        %v940 = vsel %vm442, %v937, 0
        %942 = vmatprep.subr.mxu0 0.0
        %943 = vmatpush1.xpose.msra.mxu0 %v940
        %944 = vmatprep.subr.mxu0 0.0
        %945 = vmatpush1.xpose.msra.mxu0 0.0
        %946 = vmatprep.subr.mxu0 0.0
        %947 = vmatpush1.xpose.msra.mxu0 0.0
        %948 = vmatprep.subr.mxu0 0.0
        %949 = vmatpush1.xpose.msra.mxu0 0.0
        %950 = vmatprep.subr.mxu0 0.0
        %951 = vmatpush1.xpose.msra.mxu0 0.0
        %952 = vmatprep.subr.mxu0 0.0
        %953 = vmatpush1.xpose.msra.mxu0 0.0
        %954 = vmatprep.subr.mxu0 0.0
        %955 = vmatpush1.xpose.msra.mxu0 0.0
        %956 = vmatprep.subr.mxu0 0.0
        %957 = vmatpush1.xpose.msra.mxu0 0.0
        %958 = vmatprep.subr.mxu0 0.0
        %959 = vmatpush1.xpose.msra.mxu0 0.0
        %960 = vmatprep.subr.mxu0 0.0
        %961 = vmatpush1.xpose.msra.mxu0 0.0
        %962 = vmatprep.subr.mxu0 0.0
        %963 = vmatpush1.xpose.msra.mxu0 0.0
        %964 = vmatprep.subr.mxu0 0.0
        %965 = vmatpush1.xpose.msra.mxu0 0.0
        %966 = vmatprep.subr.mxu0 0.0
        %967 = vmatpush1.xpose.msra.mxu0 0.0
        %968 = vmatprep.subr.mxu0 0.0
        %969 = vmatpush1.xpose.msra.mxu0 0.0
        %970 = vmatprep.subr.mxu0 0.0
        %971 = vmatpush1.xpose.msra.mxu0 0.0
        %972 = vmatprep.subr.mxu0 0.0
        %973 = vmatpush1.xpose.msra.mxu0 0.0
        %974 = vmatprep.subr.mxu0 0.0
        %975 = vmatpush1.xpose.msra.mxu0 0.0
        %976 = vmatprep.subr.mxu0 0.0
        %977 = vmatpush1.xpose.msra.mxu0 0.0
        %978 = vmatprep.subr.mxu0 0.0
        %979 = vmatpush1.xpose.msra.mxu0 0.0
        %980 = vmatprep.subr.mxu0 0.0
        %981 = vmatpush1.xpose.msra.mxu0 0.0
        %982 = vmatprep.subr.mxu0 0.0
        %983 = vmatpush1.xpose.msra.mxu0 0.0
        %984 = vmatprep.subr.mxu0 0.0
        %985 = vmatpush1.xpose.msra.mxu0 0.0
        %986 = vmatprep.subr.mxu0 0.0
        %987 = vmatpush1.xpose.msra.mxu0 0.0
        %988 = vmatprep.subr.mxu0 0.0
        %989 = vmatpush1.xpose.msra.mxu0 0.0
        %990 = vmatprep.subr.mxu0 0.0
        %991 = vmatpush1.xpose.msra.mxu0 0.0
        %992 = vmatprep.subr.mxu0 0.0
        %993 = vmatpush1.xpose.msra.mxu0 0.0
        %994 = vmatprep.subr.mxu0 0.0
        %995 = vmatpush1.xpose.msra.mxu0 0.0
        %996 = vmatprep.subr.mxu0 0.0
        %997 = vmatpush1.xpose.msra.mxu0 0.0
        %998 = vmatprep.subr.mxu0 0.0
        %999 = vmatpush1.xpose.msra.mxu0 0.0
        %1000 = vmatprep.subr.mxu0 0.0
        %1001 = vmatpush1.xpose.msra.mxu0 0.0
        %1002 = vmatprep.subr.mxu0 0.0
        %1003 = vmatpush1.xpose.msra.mxu0 0.0
        %1004 = vmatprep.subr.mxu0 0.0
        %1005 = vmatpush1.xpose.msra.mxu0 0.0
        %1006 = vmatprep.mubr.f32.mxu0 0.0
        %1007 = vmatmul.mubr.f32.gmra.mrb[0].mxu0 %v938
        %v1008 = vpop.f32.mrb[0].mxu0
        %v1009 = vadd.f32 0.0, %v1008
        %v1010 = vpop.f32.mrb[0].mxu0
        %1011 = vdwg.mxu0
        %v1012 = vsel %vm442, %v1009, -inf
        %1013 = vmax.xlane.f32.xlu0 %v1012
        %v1014 = vpop.xlane.xlu0 %1013
        %v1015 = vsub.f32 %v1009, %v1014
        %v1016 = vmul.f32 %v1015, 1.442695
        %v1017 = vpow.pop %v1016
        %v1018 = vsel %vm442, %v1017, 0.0
        %1019 = vadd.xlane.f32.xlu0 %v1018
        %v1020 = vpop.xlane.xlu0 %1019
        %v1021 = vrcp.pop %v1020
        %v1022 = vmul.f32 %v1017, %v1021
        %1023 = vrot.lane.b32.xlu0 %v436, 40
        %v1024 = vpop.permute.xlu0 %1023
        %v1027 = vsel %vm442, %v1022, 0
        %1029 = vmatprep.subr.mxu0 0.0
        %1030 = vmatpush1.msra.mxu0 %v1024
        %1031 = vmatprep.subr.mxu0 0.0
        %1032 = vmatpush1.msra.mxu0 0.0
        %1033 = vmatprep.subr.mxu0 0.0
        %1034 = vmatpush1.msra.mxu0 0.0
        %1035 = vmatprep.subr.mxu0 0.0
        %1036 = vmatpush1.msra.mxu0 0.0
        %1037 = vmatprep.subr.mxu0 0.0
        %1038 = vmatpush1.msra.mxu0 0.0
        %1039 = vmatprep.subr.mxu0 0.0
        %1040 = vmatpush1.msra.mxu0 0.0
        %1041 = vmatprep.subr.mxu0 0.0
        %1042 = vmatpush1.msra.mxu0 0.0
        %1043 = vmatprep.subr.mxu0 0.0
        %1044 = vmatpush1.msra.mxu0 0.0
        %1045 = vmatprep.subr.mxu0 0.0
        %1046 = vmatpush1.msra.mxu0 0.0
        %1047 = vmatprep.subr.mxu0 0.0
        %1048 = vmatpush1.msra.mxu0 0.0
        %1049 = vmatprep.subr.mxu0 0.0
        %1050 = vmatpush1.msra.mxu0 0.0
        %1051 = vmatprep.subr.mxu0 0.0
        %1052 = vmatpush1.msra.mxu0 0.0
        %1053 = vmatprep.subr.mxu0 0.0
        %1054 = vmatpush1.msra.mxu0 0.0
        %1055 = vmatprep.subr.mxu0 0.0
        %1056 = vmatpush1.msra.mxu0 0.0
        %1057 = vmatprep.subr.mxu0 0.0
        %1058 = vmatpush1.msra.mxu0 0.0
        %1059 = vmatprep.subr.mxu0 0.0
        %1060 = vmatpush1.msra.mxu0 0.0
        %1061 = vmatprep.subr.mxu0 0.0
        %1062 = vmatpush1.msra.mxu0 0.0
        %1063 = vmatprep.subr.mxu0 0.0
        %1064 = vmatpush1.msra.mxu0 0.0
        %1065 = vmatprep.subr.mxu0 0.0
        %1066 = vmatpush1.msra.mxu0 0.0
        %1067 = vmatprep.subr.mxu0 0.0
        %1068 = vmatpush1.msra.mxu0 0.0
        %1069 = vmatprep.subr.mxu0 0.0
        %1070 = vmatpush1.msra.mxu0 0.0
        %1071 = vmatprep.subr.mxu0 0.0
        %1072 = vmatpush1.msra.mxu0 0.0
        %1073 = vmatprep.subr.mxu0 0.0
        %1074 = vmatpush1.msra.mxu0 0.0
        %1075 = vmatprep.subr.mxu0 0.0
        %1076 = vmatpush1.msra.mxu0 0.0
        %1077 = vmatprep.subr.mxu0 0.0
        %1078 = vmatpush1.msra.mxu0 0.0
        %1079 = vmatprep.subr.mxu0 0.0
        %1080 = vmatpush1.msra.mxu0 0.0
        %1081 = vmatprep.subr.mxu0 0.0
        %1082 = vmatpush1.msra.mxu0 0.0
        %1083 = vmatprep.subr.mxu0 0.0
        %1084 = vmatpush1.msra.mxu0 0.0
        %1085 = vmatprep.subr.mxu0 0.0
        %1086 = vmatpush1.msra.mxu0 0.0
        %1087 = vmatprep.subr.mxu0 0.0
        %1088 = vmatpush1.msra.mxu0 0.0
        %1089 = vmatprep.subr.mxu0 0.0
        %1090 = vmatpush1.msra.mxu0 0.0
        %1091 = vmatprep.subr.mxu0 0.0
        %1092 = vmatpush1.msra.mxu0 0.0
        %1093 = vmatprep.mubr.f32.mxu0 0.0
        %1094 = vmatmul.mubr.f32.gmra.mrb[0].mxu0 %v1027
        %v1095 = vpop.f32.mrb[0].mxu0
        %v1096 = vadd.f32 0.0, %v1095
        %v1097 = vpop.f32.mrb[0].mxu0
        %1098 = vdwg.mxu0
        %1100 = vrot.lane.b32.xlu0 %v766, 8
        %v1101 = vpop.permute.xlu0 %1100
        %1104 = vrot.lane.b32.xlu0 %v931, 16
        %v1105 = vpop.permute.xlu0 %1104
        %1108 = vrot.lane.b32.xlu0 %v1096, 24
        %v1109 = vpop.permute.xlu0 %1108
        %v1111 = vsel %vm442, %v601, %v1101
        %vm1112 = vcmask 130048
        %v1113 = vsel %vm1112, %v1111, %v1105
        %vm1114 = vcmask 195584
        %v1115 = vsel %vm1114, %v1113, %v1109
        %v1116 = vld [vmem:[#allocation7] sm:$0xff]
        %v1117 = vld [vmem:[#allocation7 + $0x8] sm:$0xff]
        %v1118 = vld [vmem:[#allocation7 + $0x10] sm:$0xff]
        %v1119 = vld [vmem:[#allocation7 + $0x18] sm:$0xff]
        %v1120 = vld [vmem:[%s6] sm:$0x1]
        %v1122 = vlaneseq
        %v1123 = vshrl.u32 %v1122, 7
        %v1124 = vsub.s32 0, %v1123
        %v1125 = vrot.slane %v1120, %v1124
        %v1128 = vsel %vm324, %v1115, 0
        %1130 = vmatprep.subr.mxu0 0.0
        %1131 = vmatpush1.msra.mxu0 %v1116
        %1132 = vmatprep.subr.mxu0 0.0
        %1133 = vmatpush1.msra.mxu0 %v1117
        %1134 = vmatprep.subr.mxu0 0.0
        %1135 = vmatpush1.msra.mxu0 %v1118
        %1136 = vmatprep.subr.mxu0 0.0
        %1137 = vmatpush1.msra.mxu0 %v1119
        %1138 = vmatprep.subr.mxu0 0.0
        %1139 = vmatpush1.msra.mxu0 0.0
        %1140 = vmatprep.subr.mxu0 0.0
        %1141 = vmatpush1.msra.mxu0 0.0
        %1142 = vmatprep.subr.mxu0 0.0
        %1143 = vmatpush1.msra.mxu0 0.0
        %1144 = vmatprep.subr.mxu0 0.0
        %1145 = vmatpush1.msra.mxu0 0.0
        %1146 = vmatprep.subr.mxu0 0.0
        %1147 = vmatpush1.msra.mxu0 0.0
        %1148 = vmatprep.subr.mxu0 0.0
        %1149 = vmatpush1.msra.mxu0 0.0
        %1150 = vmatprep.subr.mxu0 0.0
        %1151 = vmatpush1.msra.mxu0 0.0
        %1152 = vmatprep.subr.mxu0 0.0
        %1153 = vmatpush1.msra.mxu0 0.0
        %1154 = vmatprep.subr.mxu0 0.0
        %1155 = vmatpush1.msra.mxu0 0.0
        %1156 = vmatprep.subr.mxu0 0.0
        %1157 = vmatpush1.msra.mxu0 0.0
        %1158 = vmatprep.subr.mxu0 0.0
        %1159 = vmatpush1.msra.mxu0 0.0
        %1160 = vmatprep.subr.mxu0 0.0
        %1161 = vmatpush1.msra.mxu0 0.0
        %1162 = vmatprep.subr.mxu0 0.0
        %1163 = vmatpush1.msra.mxu0 0.0
        %1164 = vmatprep.subr.mxu0 0.0
        %1165 = vmatpush1.msra.mxu0 0.0
        %1166 = vmatprep.subr.mxu0 0.0
        %1167 = vmatpush1.msra.mxu0 0.0
        %1168 = vmatprep.subr.mxu0 0.0
        %1169 = vmatpush1.msra.mxu0 0.0
        %1170 = vmatprep.subr.mxu0 0.0
        %1171 = vmatpush1.msra.mxu0 0.0
        %1172 = vmatprep.subr.mxu0 0.0
        %1173 = vmatpush1.msra.mxu0 0.0
        %1174 = vmatprep.subr.mxu0 0.0
        %1175 = vmatpush1.msra.mxu0 0.0
        %1176 = vmatprep.subr.mxu0 0.0
        %1177 = vmatpush1.msra.mxu0 0.0
        %1178 = vmatprep.subr.mxu0 0.0
        %1179 = vmatpush1.msra.mxu0 0.0
        %1180 = vmatprep.subr.mxu0 0.0
        %1181 = vmatpush1.msra.mxu0 0.0
        %1182 = vmatprep.subr.mxu0 0.0
        %1183 = vmatpush1.msra.mxu0 0.0
        %1184 = vmatprep.subr.mxu0 0.0
        %1185 = vmatpush1.msra.mxu0 0.0
        %1186 = vmatprep.subr.mxu0 0.0
        %1187 = vmatpush1.msra.mxu0 0.0
        %1188 = vmatprep.subr.mxu0 0.0
        %1189 = vmatpush1.msra.mxu0 0.0
        %1190 = vmatprep.subr.mxu0 0.0
        %1191 = vmatpush1.msra.mxu0 0.0
        %1192 = vmatprep.subr.mxu0 0.0
        %1193 = vmatpush1.msra.mxu0 0.0
        %1194 = vmatprep.mubr.f32.mxu0 0.0
        %1195 = vmatmul.mubr.f32.gmra.mrb[0].mxu0 %v1128
        %v1196 = vpop.f32.mrb[0].mxu0
        %v1197 = vadd.f32 %v1125, %v1196
        %v1198 = vpop.f32.mrb[0].mxu0
        %1199 = vdwg.mxu0
        %v1200 = vadd.f32 %v323, %v1197
        %1201 = vst.msk [vmem:[%s322] sm:$0xff] %vm324, %v1200
        %s1202 = sand.u32 %s185, 1
        %s1203 = scalar_lea.sflag [#allocation4], %s1202
        %s1204 = sand.u32 %s185, 1
        %s1205 = smul.addr %s1204, 8
        %s1206 = scalar_lea.vmem [#allocation8], %s1205
        // Predicated region
        $region61: #{tpu_custom_call.1} parent=47 // pred_check
          %p1207 = pneg %p195
        $region62: #{tpu_custom_call.1} parent=47 // pred_check_branch
          %1209 = sbr.rel (%p1207) target = $region64
        $region63: #{tpu_custom_call.1} parent=47 // pred_region
          %s1211 = ssub.s32 128, 128
          %1212 = vsyncadd %s1203, %s1211
          %s1213 = smul.addr %s25, 128
          %s1214 = scalar_lea.hbm %s7, %s1213
          %s1216 = sshll.u32 %s1206, 4
          %s1217 = int_to_ptr.vmem [resolvable:$true] %s1216
          %1219 = dma.vmem_to_hbm [thread:$0]  %s1217, 128, %s1214, %s1203
        $region64: #{tpu_custom_call.1} parent=47 // pred_fallthru
          _
      $region48: #{tpu_custom_call.1} parent=5 // pred_fallthru
        _
      %p1220 = scmp.le.s32.totalorder 2, %s20
      // Predicated region
      $region65: #{tpu_custom_call.1} parent=5 // pred_check
        %p1221 = pneg %p1220
      $region66: #{tpu_custom_call.1} parent=5 // pred_check_branch
        %1223 = sbr.rel (%p1221) target = $region68
      $region67: #{tpu_custom_call.1} parent=5 // pred_region
        %s1224 = ssub.s32 %s20, 2
        // Predicated region
        $region69: #{tpu_custom_call.1} parent=67 // pred_check
          %p1225 = pneg %p201
        $region70: #{tpu_custom_call.1} parent=67 // pred_check_branch
          %1227 = sbr.rel (%p1225) target = $region72
        $region71: #{tpu_custom_call.1} parent=67 // pred_region
          %s1228 = sand.u32 %s186, 1
          %s1229 = scalar_lea.sflag [#allocation4], %s1228
          %s1230 = sand.u32 %s186, 1
          %s1231 = smul.addr %s1230, 8
          %s1232 = scalar_lea.vmem [#allocation8], %s1231
          %1233 = dma.done %s1229, 128
        $region72: #{tpu_custom_call.1} parent=67 // pred_fallthru
          _
      $region68: #{tpu_custom_call.1} parent=5 // pred_fallthru
        _
    $region6: #{tpu_custom_call.1} parent=1 // loop_footer
      %s24 = sadd.s32 1, %s20
    $region7: #{tpu_custom_call.1} parent=1 // loop_footer_branch
      %19 = sbr.rel target = $region3
    $region8: #{tpu_custom_call.1} parent=1 // loop_exit
      _
    %1234 = vsyncpa [#allocation3], 1
    %s1235 = scalar_lea.sflag [#allocation3], 1
    %1236 = vsyncpa %s1235, 1
    %1237 = vsyncpa [#allocation6], 1
    %1238 = vsyncpa [#allocation4], 1
    %s1239 = scalar_lea.sflag [#allocation4], 1
    %1240 = vsyncpa %s1239, 1

</llo_original>
